<compile_context>
chip_gen: v7x
topology: tpu7x:2x2x1
jax: 0.10.0
libtpu: 0.0.40
codegen_flags: <defaults>
</compile_context>

<pallas_src>
import functools

import numpy as np
import jax
import jax.numpy as jnp
from jax import lax
from jax.experimental import pallas as pl
from jax.experimental.pallas import tpu as pltpu


def _build_tap_gather(H, W, KH, KW, stride, padding, dilation, Hout, Wout):
    """Compile-time 0/1 gather matrix folding zero-padding, dilation and stride.

    out[:, t*L + ho*Wout + wo] = x[:, hi*W + wi] for tap t=(kh,kw), or 0 if the tap falls
    in the zero-padding region. Built with numpy at trace time -> embedded constant.
    """
    T, L = KH * KW, Hout * Wout
    S = np.zeros((H * W, T * L), np.float32)
    for kh in range(KH):
        for kw in range(KW):
            t = kh * KW + kw
            for ho in range(Hout):
                hi = ho * stride + kh * dilation - padding
                if hi < 0 or hi >= H:
                    continue
                for wo in range(Wout):
                    wi = wo * stride + kw * dilation - padding
                    if wi < 0 or wi >= W:
                        continue
                    S[hi * W + wi, t * L + ho * Wout + wo] = 1.0
    return S


def depthwise_separable_conv(x_nchw, w_dw, b_dw, w_pw, b_pw, *,
                             stride=1, padding=0, dilation=1):
    """Forward pass equivalent to DepthwiseSeparableConvModule (norm=None, act=ReLU).

    Args:
      x_nchw: (N, C_in, H, W)
      w_dw:   (C_in, 1, KH, KW) depthwise weight (groups=C_in, PyTorch layout)
      b_dw:   (C_in,)
      w_pw:   (C_out, C_in, 1, 1) pointwise weight
      b_pw:   (C_out,)
    Returns:
      (N, C_out, Hout, Wout)
    """
    N, C_in, H, W = x_nchw.shape
    C_out = int(w_pw.shape[0])
    KH, KW = int(w_dw.shape[2]), int(w_dw.shape[3])
    Hout = (H + 2 * padding - dilation * (KH - 1) - 1) // stride + 1
    Wout = (W + 2 * padding - dilation * (KW - 1) - 1) // stride + 1
    T = KH * KW
    L = Hout * Wout
    f32 = jnp.float32

    # ---- wrapper-side prep: reshapes only (free), no NCHW<->NHWC transpose HBM passes ----
    x2d = x_nchw.reshape(N * C_in, H * W).astype(f32)              # row = n*C_in + c
    gather = jnp.asarray(
        _build_tap_gather(H, W, KH, KW, stride, padding, dilation, Hout, Wout))
    # Per-tap, per-(batch,channel) depthwise weights: (T, N*C_in, 1).
    wdw_taps = jnp.tile(jnp.transpose(w_dw[:, 0].reshape(C_in, T)), (1, N)).astype(f32)[..., None]
    bdw_col = jnp.tile(b_dw.astype(f32), N)[:, None]               # (N*C_in, 1)
    # Pointwise 1x1 conv as batch-block-diagonal matmul over rows.
    wpw_blk = jnp.kron(jnp.eye(N, dtype=f32), w_pw[:, :, 0, 0].astype(f32))  # (N*C_out, N*C_in)
    bpw_col = jnp.tile(b_pw.astype(f32), N)[:, None]               # (N*C_out, 1)

    def kernel(x_ref, g_ref, wdw_ref, bdw_ref, wpw_ref, bpw_ref, o_ref):
        # One MXU matmul gathers all KH*KW taps (padding/stride/dilation folded into the
        # 0/1 gather matrix); each tap lands in its own L-wide lane slab.
        taps = jnp.dot(x_ref[...], g_ref[...], preferred_element_type=f32)  # (N*C_in, T*L)

        # Depthwise accumulation: 3 independent partial accumulators (breaks the serial
        # mul+add chain across the VALUs); bias folded into accumulator 0, no zeros-init.
        n_acc = min(3, T)
        accs = [None] * n_acc
        accs[0] = bdw_ref[...]                                      # (N*C_in, 1), broadcasts
        for t in range(T):
            part = taps[:, t * L:(t + 1) * L] * wdw_ref[t]          # per-row (channel) weight
            k = t % n_acc
            accs[k] = part if accs[k] is None else accs[k] + part
        acc = accs[0]
        for a in accs[1:]:
            acc = acc + a
        dw = jnp.maximum(acc, 0.0)                                  # depthwise bias + ReLU

        # Pointwise 1x1 conv: block-diagonal matmul, result already in NCHW-flat layout.
        pw = jnp.dot(wpw_ref[...], dw, preferred_element_type=f32) + bpw_ref[...]
        o_ref[...] = jnp.maximum(pw, 0.0)                           # pointwise bias + ReLU

    out2d = pl.pallas_call(
        kernel,
        out_shape=jax.ShapeDtypeStruct((N * C_out, L), f32),
        grid=(1,),                                                  # whole batch in one step
        in_specs=[
            pl.BlockSpec((N * C_in, H * W), lambda i: (0, 0)),
            pl.BlockSpec((H * W, T * L), lambda i: (0, 0)),
            pl.BlockSpec((T, N * C_in, 1), lambda i: (0, 0, 0)),
            pl.BlockSpec((N * C_in, 1), lambda i: (0, 0)),
            pl.BlockSpec((N * C_out, N * C_in), lambda i: (0, 0)),
            pl.BlockSpec((N * C_out, 1), lambda i: (0, 0)),
        ],
        out_specs=pl.BlockSpec((N * C_out, L), lambda i: (0, 0)),
        compiler_params=pltpu.CompilerParams(
            dimension_semantics=("arbitrary",),
            vmem_limit_bytes=32 * 1024 * 1024),
    )(x2d, gather, wdw_taps, bdw_col, wpw_blk, bpw_col)

    # Free reshape back to NCHW (rows are already n-major, then c_out).
    return out2d.reshape(N, C_out, Hout, Wout).astype(x_nchw.dtype)


def _reference(x_nchw, w_dw, b_dw, w_pw, b_pw, *, stride, padding, dilation):
    """Pure-JAX reference using lax.conv_general_dilated (NCHW, like PyTorch)."""
    C_in = x_nchw.shape[1]
    dn = ("NCHW", "OIHW", "NCHW")
    y = lax.conv_general_dilated(
        x_nchw, w_dw, window_strides=(stride, stride),
        padding=[(padding, padding), (padding, padding)],
        rhs_dilation=(dilation, dilation),
        dimension_numbers=dn, feature_group_count=C_in)
    y = jnp.maximum(y + b_dw.reshape(1, -1, 1, 1), 0.0)
    z = lax.conv_general_dilated(
        y, w_pw, window_strides=(1, 1), padding=[(0, 0), (0, 0)],
        dimension_numbers=dn)
    z = jnp.maximum(z + b_pw.reshape(1, -1, 1, 1), 0.0)
    return z


if __name__ == "__main__":
    # Small shapes consistent with the module: N=2, C_in=4, C_out=8, 16x16, k=3.
    N, C_in, C_out, H, W = 2, 4, 8, 16, 16
    KH = KW = 3

    key = jax.random.PRNGKey(0)
    kx, kwd, kbd, kwp, kbp = jax.random.split(key, 5)
    x = jax.random.normal(kx, (N, C_in, H, W), dtype=jnp.float32)
    w_dw = jax.random.normal(kwd, (C_in, 1, KH, KW), dtype=jnp.float32) * 0.2
    b_dw = jax.random.normal(kbd, (C_in,), dtype=jnp.float32) * 0.1
    w_pw = jax.random.normal(kwp, (C_out, C_in, 1, 1), dtype=jnp.float32) * 0.2
    b_pw = jax.random.normal(kbp, (C_out,), dtype=jnp.float32) * 0.1

    # stride=1 (default config) and stride=2 (exercises the in-kernel stride path).
    for (stride, padding, dilation) in [(1, 1, 1), (2, 1, 1)]:
        fn = jax.jit(functools.partial(depthwise_separable_conv,
                                       stride=stride, padding=padding, dilation=dilation))
        out = jax.block_until_ready(fn(x, w_dw, b_dw, w_pw, b_pw))
        ref = _reference(x, w_dw, b_dw, w_pw, b_pw,
                         stride=stride, padding=padding, dilation=dilation)
        assert out.shape == ref.shape, (stride, out.shape, ref.shape)
        assert jnp.allclose(out, ref, atol=1e-5, rtol=1e-5), \
            (stride, float(jnp.max(jnp.abs(out - ref))))

    print("KERNEL_OK")
</pallas_src>

<mosaic_0001>
module attributes {stable_mosaic.version = 11 : i64} {
  func.func @kernel(%arg0: i32, %arg1: memref<8x256xf32, #tpu.memory_space<vmem>>, %arg2: memref<256x2304xf32, #tpu.memory_space<vmem>>, %arg3: memref<9x8x1xf32, #tpu.memory_space<vmem>>, %arg4: memref<8x1xf32, #tpu.memory_space<vmem>>, %arg5: memref<16x8xf32, #tpu.memory_space<vmem>>, %arg6: memref<16x1xf32, #tpu.memory_space<vmem>>, %arg7: memref<16x256xf32, #tpu.memory_space<vmem>>) attributes {dimension_semantics = [#tpu.dimension_semantics<arbitrary>], iteration_bounds = array<i64: 1>, scalar_prefetch = 0 : i64, scratch_operands = 0 : i64, tpu.core_type = #tpu.core_type<tc>, window_params = [{pipeline_mode = #tpu.pipeline_mode<synchronous>, transform_indices = @transform_0, window_bounds = array<i64: 8, 256>}, {pipeline_mode = #tpu.pipeline_mode<synchronous>, transform_indices = @transform_1, window_bounds = array<i64: 256, 2304>}, {pipeline_mode = #tpu.pipeline_mode<synchronous>, transform_indices = @transform_2, window_bounds = array<i64: 9, 8, 1>}, {pipeline_mode = #tpu.pipeline_mode<synchronous>, transform_indices = @transform_3, window_bounds = array<i64: 8, 1>}, {pipeline_mode = #tpu.pipeline_mode<synchronous>, transform_indices = @transform_4, window_bounds = array<i64: 16, 8>}, {pipeline_mode = #tpu.pipeline_mode<synchronous>, transform_indices = @transform_5, window_bounds = array<i64: 16, 1>}, {pipeline_mode = #tpu.pipeline_mode<synchronous>, transform_indices = @transform_6, window_bounds = array<i64: 16, 256>}]} {
    %c0 = arith.constant 0 : index
    %c0_0 = arith.constant 0 : index
    %0 = vector.load %arg1[%c0, %c0_0] : memref<8x256xf32, #tpu.memory_space<vmem>>, vector<8x256xf32>
    %c0_1 = arith.constant 0 : index
    %c0_2 = arith.constant 0 : index
    %1 = vector.load %arg2[%c0_1, %c0_2] : memref<256x2304xf32, #tpu.memory_space<vmem>>, vector<256x2304xf32>
    %cst = arith.constant dense<0.000000e+00> : vector<8x2304xf32>
    %2 = tpu.matmul %0, %1, %cst {dimension_numbers = #tpu.dot_dimension_numbers<[1], [0], [0], [1], [0, 0, 1, 1], [], []>} : vector<8x256xf32>, vector<256x2304xf32>, vector<8x2304xf32> -> vector<8x2304xf32>
    %c0_3 = arith.constant 0 : index
    %c0_4 = arith.constant 0 : index
    %3 = vector.load %arg4[%c0_3, %c0_4] : memref<8x1xf32, #tpu.memory_space<vmem>>, vector<8x1xf32>
    %4 = vector.extract_strided_slice %2 {offsets = [0, 0], sizes = [8, 256], strides = [1, 1]} : vector<8x2304xf32> to vector<8x256xf32>
    %c0_5 = arith.constant 0 : index
    %c0_6 = arith.constant 0 : index
    %c0_7 = arith.constant 0 : index
    %5 = vector.load %arg3[%c0_5, %c0_6, %c0_7] : memref<9x8x1xf32, #tpu.memory_space<vmem>>, vector<1x8x1xf32>
    %6 = vector.shape_cast %5 : vector<1x8x1xf32> to vector<8x1xf32>
    %7 = vector.broadcast %6 : vector<8x1xf32> to vector<8x256xf32>
    %8 = arith.mulf %4, %7 : vector<8x256xf32>
    %9 = vector.broadcast %3 : vector<8x1xf32> to vector<8x256xf32>
    %10 = arith.addf %9, %8 : vector<8x256xf32>
    %11 = vector.extract_strided_slice %2 {offsets = [0, 256], sizes = [8, 256], strides = [1, 1]} : vector<8x2304xf32> to vector<8x256xf32>
    %c1 = arith.constant 1 : index
    %c0_8 = arith.constant 0 : index
    %c0_9 = arith.constant 0 : index
    %12 = vector.load %arg3[%c1, %c0_8, %c0_9] : memref<9x8x1xf32, #tpu.memory_space<vmem>>, vector<1x8x1xf32>
    %13 = vector.shape_cast %12 : vector<1x8x1xf32> to vector<8x1xf32>
    %14 = vector.broadcast %13 : vector<8x1xf32> to vector<8x256xf32>
    %15 = arith.mulf %11, %14 : vector<8x256xf32>
    %16 = vector.extract_strided_slice %2 {offsets = [0, 512], sizes = [8, 256], strides = [1, 1]} : vector<8x2304xf32> to vector<8x256xf32>
    %c2 = arith.constant 2 : index
    %c0_10 = arith.constant 0 : index
    %c0_11 = arith.constant 0 : index
    %17 = vector.load %arg3[%c2, %c0_10, %c0_11] : memref<9x8x1xf32, #tpu.memory_space<vmem>>, vector<1x8x1xf32>
    %18 = vector.shape_cast %17 : vector<1x8x1xf32> to vector<8x1xf32>
    %19 = vector.broadcast %18 : vector<8x1xf32> to vector<8x256xf32>
    %20 = arith.mulf %16, %19 : vector<8x256xf32>
    %21 = vector.extract_strided_slice %2 {offsets = [0, 768], sizes = [8, 256], strides = [1, 1]} : vector<8x2304xf32> to vector<8x256xf32>
    %c3 = arith.constant 3 : index
    %c0_12 = arith.constant 0 : index
    %c0_13 = arith.constant 0 : index
    %22 = vector.load %arg3[%c3, %c0_12, %c0_13] : memref<9x8x1xf32, #tpu.memory_space<vmem>>, vector<1x8x1xf32>
    %23 = vector.shape_cast %22 : vector<1x8x1xf32> to vector<8x1xf32>
    %24 = vector.broadcast %23 : vector<8x1xf32> to vector<8x256xf32>
    %25 = arith.mulf %21, %24 : vector<8x256xf32>
    %26 = arith.addf %10, %25 : vector<8x256xf32>
    %27 = vector.extract_strided_slice %2 {offsets = [0, 1024], sizes = [8, 256], strides = [1, 1]} : vector<8x2304xf32> to vector<8x256xf32>
    %c4 = arith.constant 4 : index
    %c0_14 = arith.constant 0 : index
    %c0_15 = arith.constant 0 : index
    %28 = vector.load %arg3[%c4, %c0_14, %c0_15] : memref<9x8x1xf32, #tpu.memory_space<vmem>>, vector<1x8x1xf32>
    %29 = vector.shape_cast %28 : vector<1x8x1xf32> to vector<8x1xf32>
    %30 = vector.broadcast %29 : vector<8x1xf32> to vector<8x256xf32>
    %31 = arith.mulf %27, %30 : vector<8x256xf32>
    %32 = arith.addf %15, %31 : vector<8x256xf32>
    %33 = vector.extract_strided_slice %2 {offsets = [0, 1280], sizes = [8, 256], strides = [1, 1]} : vector<8x2304xf32> to vector<8x256xf32>
    %c5 = arith.constant 5 : index
    %c0_16 = arith.constant 0 : index
    %c0_17 = arith.constant 0 : index
    %34 = vector.load %arg3[%c5, %c0_16, %c0_17] : memref<9x8x1xf32, #tpu.memory_space<vmem>>, vector<1x8x1xf32>
    %35 = vector.shape_cast %34 : vector<1x8x1xf32> to vector<8x1xf32>
    %36 = vector.broadcast %35 : vector<8x1xf32> to vector<8x256xf32>
    %37 = arith.mulf %33, %36 : vector<8x256xf32>
    %38 = arith.addf %20, %37 : vector<8x256xf32>
    %39 = vector.extract_strided_slice %2 {offsets = [0, 1536], sizes = [8, 256], strides = [1, 1]} : vector<8x2304xf32> to vector<8x256xf32>
    %c6 = arith.constant 6 : index
    %c0_18 = arith.constant 0 : index
    %c0_19 = arith.constant 0 : index
    %40 = vector.load %arg3[%c6, %c0_18, %c0_19] : memref<9x8x1xf32, #tpu.memory_space<vmem>>, vector<1x8x1xf32>
    %41 = vector.shape_cast %40 : vector<1x8x1xf32> to vector<8x1xf32>
    %42 = vector.broadcast %41 : vector<8x1xf32> to vector<8x256xf32>
    %43 = arith.mulf %39, %42 : vector<8x256xf32>
    %44 = arith.addf %26, %43 : vector<8x256xf32>
    %45 = vector.extract_strided_slice %2 {offsets = [0, 1792], sizes = [8, 256], strides = [1, 1]} : vector<8x2304xf32> to vector<8x256xf32>
    %c7 = arith.constant 7 : index
    %c0_20 = arith.constant 0 : index
    %c0_21 = arith.constant 0 : index
    %46 = vector.load %arg3[%c7, %c0_20, %c0_21] : memref<9x8x1xf32, #tpu.memory_space<vmem>>, vector<1x8x1xf32>
    %47 = vector.shape_cast %46 : vector<1x8x1xf32> to vector<8x1xf32>
    %48 = vector.broadcast %47 : vector<8x1xf32> to vector<8x256xf32>
    %49 = arith.mulf %45, %48 : vector<8x256xf32>
    %50 = arith.addf %32, %49 : vector<8x256xf32>
    %51 = vector.extract_strided_slice %2 {offsets = [0, 2048], sizes = [8, 256], strides = [1, 1]} : vector<8x2304xf32> to vector<8x256xf32>
    %c8 = arith.constant 8 : index
    %c0_22 = arith.constant 0 : index
    %c0_23 = arith.constant 0 : index
    %52 = vector.load %arg3[%c8, %c0_22, %c0_23] : memref<9x8x1xf32, #tpu.memory_space<vmem>>, vector<1x8x1xf32>
    %53 = vector.shape_cast %52 : vector<1x8x1xf32> to vector<8x1xf32>
    %54 = vector.broadcast %53 : vector<8x1xf32> to vector<8x256xf32>
    %55 = arith.mulf %51, %54 : vector<8x256xf32>
    %56 = arith.addf %38, %55 : vector<8x256xf32>
    %57 = arith.addf %44, %50 : vector<8x256xf32>
    %58 = arith.addf %57, %56 : vector<8x256xf32>
    %cst_24 = arith.constant 0.000000e+00 : f32
    %59 = vector.broadcast %cst_24 : f32 to vector<8x256xf32>
    %60 = arith.maximumf %58, %59 : vector<8x256xf32>
    %c0_25 = arith.constant 0 : index
    %c0_26 = arith.constant 0 : index
    %61 = vector.load %arg5[%c0_25, %c0_26] : memref<16x8xf32, #tpu.memory_space<vmem>>, vector<16x8xf32>
    %cst_27 = arith.constant dense<0.000000e+00> : vector<16x256xf32>
    %62 = tpu.matmul %61, %60, %cst_27 {dimension_numbers = #tpu.dot_dimension_numbers<[1], [0], [0], [1], [0, 0, 1, 1], [], []>} : vector<16x8xf32>, vector<8x256xf32>, vector<16x256xf32> -> vector<16x256xf32>
    %c0_28 = arith.constant 0 : index
    %c0_29 = arith.constant 0 : index
    %63 = vector.load %arg6[%c0_28, %c0_29] : memref<16x1xf32, #tpu.memory_space<vmem>>, vector<16x1xf32>
    %64 = vector.broadcast %63 : vector<16x1xf32> to vector<16x256xf32>
    %65 = arith.addf %62, %64 : vector<16x256xf32>
    %cst_30 = arith.constant 0.000000e+00 : f32
    %66 = vector.broadcast %cst_30 : f32 to vector<16x256xf32>
    %67 = arith.maximumf %65, %66 : vector<16x256xf32>
    %c0_31 = arith.constant 0 : index
    %c0_32 = arith.constant 0 : index
    %68 = vector.load %arg7[%c0_31, %c0_32] : memref<16x256xf32, #tpu.memory_space<vmem>>, vector<16x256xf32>
    tpu.vector_store %arg7[%c0_31, %c0_32], %67 {strides = array<i32>} : memref<16x256xf32, #tpu.memory_space<vmem>>, vector<16x256xf32>,
    return
  }
  func.func @transform_0(%arg0: i32) -> (i32, i32) {
    %c0_i32 = arith.constant 0 : i32
    %c0_i32_0 = arith.constant 0 : i32
    %c0_i32_1 = arith.constant 0 : i32
    return %c0_i32, %c0_i32_0 : i32, i32
  }
  func.func @transform_1(%arg0: i32) -> (i32, i32) {
    %c0_i32 = arith.constant 0 : i32
    %c0_i32_0 = arith.constant 0 : i32
    %c0_i32_1 = arith.constant 0 : i32
    return %c0_i32, %c0_i32_0 : i32, i32
  }
  func.func @transform_2(%arg0: i32) -> (i32, i32, i32) {
    %c0_i32 = arith.constant 0 : i32
    %c0_i32_0 = arith.constant 0 : i32
    %c0_i32_1 = arith.constant 0 : i32
    %c0_i32_2 = arith.constant 0 : i32
    return %c0_i32, %c0_i32_0, %c0_i32_1 : i32, i32, i32
  }
  func.func @transform_3(%arg0: i32) -> (i32, i32) {
    %c0_i32 = arith.constant 0 : i32
    %c0_i32_0 = arith.constant 0 : i32
    %c0_i32_1 = arith.constant 0 : i32
    return %c0_i32, %c0_i32_0 : i32, i32
  }
  func.func @transform_4(%arg0: i32) -> (i32, i32) {
    %c0_i32 = arith.constant 0 : i32
    %c0_i32_0 = arith.constant 0 : i32
    %c0_i32_1 = arith.constant 0 : i32
    return %c0_i32, %c0_i32_0 : i32, i32
  }
  func.func @transform_5(%arg0: i32) -> (i32, i32) {
    %c0_i32 = arith.constant 0 : i32
    %c0_i32_0 = arith.constant 0 : i32
    %c0_i32_1 = arith.constant 0 : i32
    return %c0_i32, %c0_i32_0 : i32, i32
  }
  func.func @transform_6(%arg0: i32) -> (i32, i32) {
    %c0_i32 = arith.constant 0 : i32
    %c0_i32_0 = arith.constant 0 : i32
    %c0_i32_1 = arith.constant 0 : i32
    return %c0_i32, %c0_i32_0 : i32, i32
  }
}

</mosaic_0001>

<llo_original>
// kernel: tile.0
$region0: #{tile.0}
  %s0 = inlined_call_operand.vmem [shape: f32[2,4], index: 0, kind: input, shape index: {}]
  %s1 = inlined_call_operand.vmem [shape: f32[8,1], index: 1, kind: output, shape index: {}]
  $region1: #{tile.0} parent=0
    #allocation0 [shape = 'u8[4096]{0}', space=vmem, size = 0x1000, scoped, tag = 'scoped mem for input reshape']
    %s3 = sshllo.u32 0, 2
    %v4 = vld [vmem:[%s0] sm:%s3]
    %5 = vst [vmem:[#allocation0] sm:%s3] %v4
    %v6 = vld [vmem:[#allocation0] sm:$0x3]
    %vm7 = vcmask 7168
    %8 = vst.msk [vmem:[%s1] ss:$4 sm:$0x3] %vm7, %v6
    %v9 = vld [vmem:[#allocation0] sm:$0x3]
    %10 = vrot.lane.b32.xlu0 %v9, 127
    %v11 = vpop.permute.xlu0 %10
    %vm12 = vcmask 7168
    %s13 = scalar_lea.vmem %s1, 1
    %14 = vst.msk [vmem:[%s13] ss:$4 sm:$0x3] %vm12, %v11
    %v15 = vld [vmem:[#allocation0] sm:$0x3]
    %16 = vrot.lane.b32.xlu0 %v15, 126
    %v17 = vpop.permute.xlu0 %16
    %vm18 = vcmask 7168
    %s19 = scalar_lea.vmem %s1, 2
    %20 = vst.msk [vmem:[%s19] ss:$4 sm:$0x3] %vm18, %v17
    %v21 = vld [vmem:[#allocation0] sm:$0x3]
    %22 = vrot.lane.b32.xlu0 %v21, 125
    %v23 = vpop.permute.xlu0 %22
    %vm24 = vcmask 7168
    %s25 = scalar_lea.vmem %s1, 3
    %26 = vst.msk [vmem:[%s25] ss:$4 sm:$0x3] %vm24, %v23

// kernel: tile.23
$region0: #{tile.23}
  #allocation2 [shape = 's32[1]{0}', space=sflag, size = 0x4, scoped, tag = 'scoped memory for tile.23']
  %s0 = inlined_call_operand.hbm [shape: f32[4], index: 0, kind: input, shape index: {}]
  %s1 = inlined_call_operand.vmem [shape: f32[2,4], index: 1, kind: output, shape index: {}]
  $region1: #{tile.23} parent=0
    #allocation0 [shape = 'u8[512]{0}', space=vmem, size = 0x400, scoped, tag = 'operand span for operand 0']
    #allocation1 [shape = 's32[1]{0}', space=sflag, size = 0x4, scoped, tag = 'scoped memory for tile.23']
    %2 = vsyncpa [#allocation1], 0
    // Predicated region
    $region2: #{tile.23} parent=1 // pred_check
      _
    $region3: #{tile.23} parent=1 // pred_check_branch
      %4 = sbr.rel (0) target = $region5
    $region4: #{tile.23} parent=1 // pred_region
      %s6 = ssub.s32 16, 16
      %7 = vsyncadd [#allocation1], %s6
      %s9 = sshll.u32 [#allocation0], 4
      %s10 = int_to_ptr.vmem [resolvable:$true] %s9
      %12 = dma.hbm_to_vmem [thread:$0]  %s0, 16, %s10, [#allocation1]
    $region5: #{tile.23} parent=1 // pred_fallthru
      _
    // Predicated region
    $region6: #{tile.23} parent=1 // pred_check
      _
    $region7: #{tile.23} parent=1 // pred_check_branch
      %14 = sbr.rel (0) target = $region9
    $region8: #{tile.23} parent=1 // pred_region
      %15 = dma.done [#allocation1], 16
    $region9: #{tile.23} parent=1 // pred_fallthru
      _
    %v16 = vld [vmem:[#allocation0] ss:$0 sm:$0xff]
    %17 = vst [vmem:[%s1] sm:$0x3] %v16
    %18 = vsyncpa [#allocation1], 1

// kernel: tile.28
$region0: #{tile.28}
  #allocation2 [shape = 's32[1]{0}', space=sflag, size = 0x4, scoped, tag = 'scoped memory for tile.28']
  %s0 = inlined_call_operand.hbm [shape: f32[8], index: 0, kind: input, shape index: {}]
  %s1 = inlined_call_operand.vmem [shape: f32[2,8], index: 1, kind: output, shape index: {}]
  $region1: #{tile.28} parent=0
    #allocation0 [shape = 'u8[512]{0}', space=vmem, size = 0x400, scoped, tag = 'operand span for operand 0']
    #allocation1 [shape = 's32[1]{0}', space=sflag, size = 0x4, scoped, tag = 'scoped memory for tile.28']
    %2 = vsyncpa [#allocation1], 0
    // Predicated region
    $region2: #{tile.28} parent=1 // pred_check
      _
    $region3: #{tile.28} parent=1 // pred_check_branch
      %4 = sbr.rel (0) target = $region5
    $region4: #{tile.28} parent=1 // pred_region
      %s6 = ssub.s32 16, 16
      %7 = vsyncadd [#allocation1], %s6
      %s9 = sshll.u32 [#allocation0], 4
      %s10 = int_to_ptr.vmem [resolvable:$true] %s9
      %12 = dma.hbm_to_vmem [thread:$0]  %s0, 16, %s10, [#allocation1]
    $region5: #{tile.28} parent=1 // pred_fallthru
      _
    // Predicated region
    $region6: #{tile.28} parent=1 // pred_check
      _
    $region7: #{tile.28} parent=1 // pred_check_branch
      %14 = sbr.rel (0) target = $region9
    $region8: #{tile.28} parent=1 // pred_region
      %15 = dma.done [#allocation1], 16
    $region9: #{tile.28} parent=1 // pred_fallthru
      _
    %v16 = vld [vmem:[#allocation0] ss:$0 sm:$0xff]
    %17 = vst [vmem:[%s1] sm:$0x3] %v16
    %18 = vsyncpa [#allocation1], 1

// kernel: tile.1
$region0: #{tile.1}
  %s0 = inlined_call_operand.vmem [shape: f32[2,8], index: 0, kind: input, shape index: {}]
  %s1 = inlined_call_operand.vmem [shape: f32[16,1], index: 1, kind: output, shape index: {}]
  $region1: #{tile.1} parent=0
    #allocation0 [shape = 'u8[4096]{0}', space=vmem, size = 0x1000, scoped, tag = 'scoped mem for input reshape']
    %s3 = sshllo.u32 0, 2
    %v4 = vld [vmem:[%s0] sm:%s3]
    %5 = vst [vmem:[#allocation0] sm:%s3] %v4
    %v6 = vld [vmem:[#allocation0] sm:$0x3]
    %vm7 = vcmask 7168
    %8 = vst.msk [vmem:[%s1] ss:$8 sm:$0x3] %vm7, %v6
    %v9 = vld [vmem:[#allocation0] sm:$0x3]
    %10 = vrot.lane.b32.xlu0 %v9, 127
    %v11 = vpop.permute.xlu0 %10
    %vm12 = vcmask 7168
    %s13 = scalar_lea.vmem %s1, 1
    %14 = vst.msk [vmem:[%s13] ss:$8 sm:$0x3] %vm12, %v11
    %v15 = vld [vmem:[#allocation0] sm:$0x3]
    %16 = vrot.lane.b32.xlu0 %v15, 126
    %v17 = vpop.permute.xlu0 %16
    %vm18 = vcmask 7168
    %s19 = scalar_lea.vmem %s1, 2
    %20 = vst.msk [vmem:[%s19] ss:$8 sm:$0x3] %vm18, %v17
    %v21 = vld [vmem:[#allocation0] sm:$0x3]
    %22 = vrot.lane.b32.xlu0 %v21, 125
    %v23 = vpop.permute.xlu0 %22
    %vm24 = vcmask 7168
    %s25 = scalar_lea.vmem %s1, 3
    %26 = vst.msk [vmem:[%s25] ss:$8 sm:$0x3] %vm24, %v23
    %v27 = vld [vmem:[#allocation0] sm:$0x3]
    %28 = vrot.lane.b32.xlu0 %v27, 124
    %v29 = vpop.permute.xlu0 %28
    %vm30 = vcmask 7168
    %s31 = scalar_lea.vmem %s1, 4
    %32 = vst.msk [vmem:[%s31] ss:$8 sm:$0x3] %vm30, %v29
    %v33 = vld [vmem:[#allocation0] sm:$0x3]
    %34 = vrot.lane.b32.xlu0 %v33, 123
    %v35 = vpop.permute.xlu0 %34
    %vm36 = vcmask 7168
    %s37 = scalar_lea.vmem %s1, 5
    %38 = vst.msk [vmem:[%s37] ss:$8 sm:$0x3] %vm36, %v35
    %v39 = vld [vmem:[#allocation0] sm:$0x3]
    %40 = vrot.lane.b32.xlu0 %v39, 122
    %v41 = vpop.permute.xlu0 %40
    %vm42 = vcmask 7168
    %s43 = scalar_lea.vmem %s1, 6
    %44 = vst.msk [vmem:[%s43] ss:$8 sm:$0x3] %vm42, %v41
    %v45 = vld [vmem:[#allocation0] sm:$0x3]
    %46 = vrot.lane.b32.xlu0 %v45, 121
    %v47 = vpop.permute.xlu0 %46
    %vm48 = vcmask 7168
    %s49 = scalar_lea.vmem %s1, 7
    %50 = vst.msk [vmem:[%s49] ss:$8 sm:$0x3] %vm48, %v47

// kernel: depthwise_separable_conv.1
$region0: #{depthwise_separable_conv.1}
  #allocation0 [shape = 'u32[]', space=smem, size = 0x4, offset = 0x4, fixed_abs, tag = 'smem constant byte address 0x4 - core index']
  #allocation1 [shape = 'u32[144,128]{1,0:T(1,128)}', space=vmem, size = 0x12000, scoped, tag = 'internal scratch']
  %s0 = inlined_call_operand.vmem [shape: f32[8,256], index: 0, kind: input, shape index: {}]
  %s1 = inlined_call_operand.hbm [shape: f32[256,2304], index: 1, kind: input, shape index: {}]
  %s2 = inlined_call_operand.vmem [shape: f32[9,8,1], index: 2, kind: input, shape index: {}]
  %s3 = inlined_call_operand.vmem [shape: f32[8,1], index: 3, kind: input, shape index: {}]
  %s4 = inlined_call_operand.vmem [shape: f32[16,8], index: 4, kind: input, shape index: {}]
  %s5 = inlined_call_operand.vmem [shape: f32[16,1], index: 5, kind: input, shape index: {}]
  %s6 = inlined_call_operand.vmem [shape: f32[16,256], index: 6, kind: output, shape index: {}]
  %s7 = sld [smem:[#allocation0]]
  $region38: #{depthwise_separable_conv.1} parent=0
    _
  %s9 = ssub.s32 1, %s7
  %s10 = scalar_select 0, %s9, %s7
  $region1: #{depthwise_separable_conv.1} parent=0
    #allocation2 [shape = 'u8[2359296]{0}', space=vmem, size = 0x240000, scoped, tag = 'input window, operand 1, single buffered']
    #allocation3 [shape = 's32[1]{0}', space=sflag, size = 0x4, scoped, tag = 'scoped memory for depthwise_separable_conv.1']
    %11 = vsyncpa [#allocation3], 0
    // Predicated region
    $region2: #{depthwise_separable_conv.1} parent=1 // pred_check
      _
    $region3: #{depthwise_separable_conv.1} parent=1 // pred_check_branch
      %13 = sbr.rel (0) target = $region5
    $region4: #{depthwise_separable_conv.1} parent=1 // pred_region
      _
    $region5: #{depthwise_separable_conv.1} parent=1 // pred_fallthru
      _
    // Predicated region
    $region6: #{depthwise_separable_conv.1} parent=1 // pred_check
      _
    $region7: #{depthwise_separable_conv.1} parent=1 // pred_check_branch
      %15 = sbr.rel (0) target = $region9
    $region8: #{depthwise_separable_conv.1} parent=1 // pred_region
      %s17 = ssub.s32 73728, 73728
      %18 = vsyncadd [#allocation3], %s17
      %s19 = sshll.u32 [#allocation2], 4
      %s20 = int_to_ptr.vmem [resolvable:$true] %s19
      %25 = dma.hbm_to_vmem [thread:$0]  %s1, 73728, %s20, [#allocation3], 2304, 2304, 144
    $region9: #{depthwise_separable_conv.1} parent=1 // pred_fallthru
      _
    // Predicated region
    $region10: #{depthwise_separable_conv.1} parent=1 // pred_check
      _
    $region11: #{depthwise_separable_conv.1} parent=1 // pred_check_branch
      %27 = sbr.rel (0) target = $region13
    $region12: #{depthwise_separable_conv.1} parent=1 // pred_region
      _
    $region13: #{depthwise_separable_conv.1} parent=1 // pred_fallthru
      _
    // Predicated region
    $region14: #{depthwise_separable_conv.1} parent=1 // pred_check
      _
    $region15: #{depthwise_separable_conv.1} parent=1 // pred_check_branch
      %29 = sbr.rel (0) target = $region17
    $region16: #{depthwise_separable_conv.1} parent=1 // pred_region
      _
    $region17: #{depthwise_separable_conv.1} parent=1 // pred_fallthru
      _
    // Predicated region
    $region18: #{depthwise_separable_conv.1} parent=1 // pred_check
      _
    $region19: #{depthwise_separable_conv.1} parent=1 // pred_check_branch
      %31 = sbr.rel (0) target = $region21
    $region20: #{depthwise_separable_conv.1} parent=1 // pred_region
      _
    $region21: #{depthwise_separable_conv.1} parent=1 // pred_fallthru
      _
    // Predicated region
    $region22: #{depthwise_separable_conv.1} parent=1 // pred_check
      _
    $region23: #{depthwise_separable_conv.1} parent=1 // pred_check_branch
      %33 = sbr.rel (0) target = $region25
    $region24: #{depthwise_separable_conv.1} parent=1 // pred_region
      _
    $region25: #{depthwise_separable_conv.1} parent=1 // pred_fallthru
      _
    // Predicated region
    $region26: #{depthwise_separable_conv.1} parent=1 // pred_check
      _
    $region27: #{depthwise_separable_conv.1} parent=1 // pred_check_branch
      %35 = sbr.rel (0) target = $region29
    $region28: #{depthwise_separable_conv.1} parent=1 // pred_region
      %36 = dma.done [#allocation3], 73728
    $region29: #{depthwise_separable_conv.1} parent=1 // pred_fallthru
      _
    %v37 = vld [vmem:[%s0] sm:$0xff]
    %v38 = vld [vmem:[%s0 + $0x8] sm:$0xff]
    %v39 = vld [vmem:[#allocation2] sm:$0xff]
    %v40 = vld [vmem:[#allocation2 + $0x8] sm:$0xff]
    %v41 = vld [vmem:[#allocation2 + $0x10] sm:$0xff]
    %v42 = vld [vmem:[#allocation2 + $0x18] sm:$0xff]
    %v43 = vld [vmem:[#allocation2 + $0x20] sm:$0xff]
    %v44 = vld [vmem:[#allocation2 + $0x28] sm:$0xff]
    %v45 = vld [vmem:[#allocation2 + $0x30] sm:$0xff]
    %v46 = vld [vmem:[#allocation2 + $0x38] sm:$0xff]
    %v47 = vld [vmem:[#allocation2 + $0x40] sm:$0xff]
    %v48 = vld [vmem:[#allocation2 + $0x48] sm:$0xff]
    %v49 = vld [vmem:[#allocation2 + $0x50] sm:$0xff]
    %v50 = vld [vmem:[#allocation2 + $0x58] sm:$0xff]
    %v51 = vld [vmem:[#allocation2 + $0x60] sm:$0xff]
    %v52 = vld [vmem:[#allocation2 + $0x68] sm:$0xff]
    %v53 = vld [vmem:[#allocation2 + $0x70] sm:$0xff]
    %v54 = vld [vmem:[#allocation2 + $0x78] sm:$0xff]
    %v55 = vld [vmem:[#allocation2 + $0x80] sm:$0xff]
    %v56 = vld [vmem:[#allocation2 + $0x88] sm:$0xff]
    %v57 = vld [vmem:[#allocation2 + $0x90] sm:$0xff]
    %v58 = vld [vmem:[#allocation2 + $0x98] sm:$0xff]
    %v59 = vld [vmem:[#allocation2 + $0xa0] sm:$0xff]
    %v60 = vld [vmem:[#allocation2 + $0xa8] sm:$0xff]
    %v61 = vld [vmem:[#allocation2 + $0xb0] sm:$0xff]
    %v62 = vld [vmem:[#allocation2 + $0xb8] sm:$0xff]
    %v63 = vld [vmem:[#allocation2 + $0xc0] sm:$0xff]
    %v64 = vld [vmem:[#allocation2 + $0xc8] sm:$0xff]
    %v65 = vld [vmem:[#allocation2 + $0xd0] sm:$0xff]
    %v66 = vld [vmem:[#allocation2 + $0xd8] sm:$0xff]
    %v67 = vld [vmem:[#allocation2 + $0xe0] sm:$0xff]
    %v68 = vld [vmem:[#allocation2 + $0xe8] sm:$0xff]
    %v69 = vld [vmem:[#allocation2 + $0xf0] sm:$0xff]
    %v70 = vld [vmem:[#allocation2 + $0xf8] sm:$0xff]
    %v71 = vld [vmem:[#allocation2 + $0x100] sm:$0xff]
    %v72 = vld [vmem:[#allocation2 + $0x108] sm:$0xff]
    %v73 = vld [vmem:[#allocation2 + $0x110] sm:$0xff]
    %v74 = vld [vmem:[#allocation2 + $0x118] sm:$0xff]
    %v75 = vld [vmem:[#allocation2 + $0x120] sm:$0xff]
    %v76 = vld [vmem:[#allocation2 + $0x128] sm:$0xff]
    %v77 = vld [vmem:[#allocation2 + $0x130] sm:$0xff]
    %v78 = vld [vmem:[#allocation2 + $0x138] sm:$0xff]
    %v79 = vld [vmem:[#allocation2 + $0x140] sm:$0xff]
    %v80 = vld [vmem:[#allocation2 + $0x148] sm:$0xff]
    %v81 = vld [vmem:[#allocation2 + $0x150] sm:$0xff]
    %v82 = vld [vmem:[#allocation2 + $0x158] sm:$0xff]
    %v83 = vld [vmem:[#allocation2 + $0x160] sm:$0xff]
    %v84 = vld [vmem:[#allocation2 + $0x168] sm:$0xff]
    %v85 = vld [vmem:[#allocation2 + $0x170] sm:$0xff]
    %v86 = vld [vmem:[#allocation2 + $0x178] sm:$0xff]
    %v87 = vld [vmem:[#allocation2 + $0x180] sm:$0xff]
    %v88 = vld [vmem:[#allocation2 + $0x188] sm:$0xff]
    %v89 = vld [vmem:[#allocation2 + $0x190] sm:$0xff]
    %v90 = vld [vmem:[#allocation2 + $0x198] sm:$0xff]
    %v91 = vld [vmem:[#allocation2 + $0x1a0] sm:$0xff]
    %v92 = vld [vmem:[#allocation2 + $0x1a8] sm:$0xff]
    %v93 = vld [vmem:[#allocation2 + $0x1b0] sm:$0xff]
    %v94 = vld [vmem:[#allocation2 + $0x1b8] sm:$0xff]
    %v95 = vld [vmem:[#allocation2 + $0x1c0] sm:$0xff]
    %v96 = vld [vmem:[#allocation2 + $0x1c8] sm:$0xff]
    %v97 = vld [vmem:[#allocation2 + $0x1d0] sm:$0xff]
    %v98 = vld [vmem:[#allocation2 + $0x1d8] sm:$0xff]
    %v99 = vld [vmem:[#allocation2 + $0x1e0] sm:$0xff]
    %v100 = vld [vmem:[#allocation2 + $0x1e8] sm:$0xff]
    %v101 = vld [vmem:[#allocation2 + $0x1f0] sm:$0xff]
    %v102 = vld [vmem:[#allocation2 + $0x1f8] sm:$0xff]
    %v103 = vld [vmem:[#allocation2 + $0x200] sm:$0xff]
    %v104 = vld [vmem:[#allocation2 + $0x208] sm:$0xff]
    %v105 = vld [vmem:[#allocation2 + $0x210] sm:$0xff]
    %v106 = vld [vmem:[#allocation2 + $0x218] sm:$0xff]
    %v107 = vld [vmem:[#allocation2 + $0x220] sm:$0xff]
    %v108 = vld [vmem:[#allocation2 + $0x228] sm:$0xff]
    %v109 = vld [vmem:[#allocation2 + $0x230] sm:$0xff]
    %v110 = vld [vmem:[#allocation2 + $0x238] sm:$0xff]
    %v111 = vld [vmem:[#allocation2 + $0x240] sm:$0xff]
    %v112 = vld [vmem:[#allocation2 + $0x248] sm:$0xff]
    %v113 = vld [vmem:[#allocation2 + $0x250] sm:$0xff]
    %v114 = vld [vmem:[#allocation2 + $0x258] sm:$0xff]
    %v115 = vld [vmem:[#allocation2 + $0x260] sm:$0xff]
    %v116 = vld [vmem:[#allocation2 + $0x268] sm:$0xff]
    %v117 = vld [vmem:[#allocation2 + $0x270] sm:$0xff]
    %v118 = vld [vmem:[#allocation2 + $0x278] sm:$0xff]
    %v119 = vld [vmem:[#allocation2 + $0x280] sm:$0xff]
    %v120 = vld [vmem:[#allocation2 + $0x288] sm:$0xff]
    %v121 = vld [vmem:[#allocation2 + $0x290] sm:$0xff]
    %v122 = vld [vmem:[#allocation2 + $0x298] sm:$0xff]
    %v123 = vld [vmem:[#allocation2 + $0x2a0] sm:$0xff]
    %v124 = vld [vmem:[#allocation2 + $0x2a8] sm:$0xff]
    %v125 = vld [vmem:[#allocation2 + $0x2b0] sm:$0xff]
    %v126 = vld [vmem:[#allocation2 + $0x2b8] sm:$0xff]
    %v127 = vld [vmem:[#allocation2 + $0x2c0] sm:$0xff]
    %v128 = vld [vmem:[#allocation2 + $0x2c8] sm:$0xff]
    %v129 = vld [vmem:[#allocation2 + $0x2d0] sm:$0xff]
    %v130 = vld [vmem:[#allocation2 + $0x2d8] sm:$0xff]
    %v131 = vld [vmem:[#allocation2 + $0x2e0] sm:$0xff]
    %v132 = vld [vmem:[#allocation2 + $0x2e8] sm:$0xff]
    %v133 = vld [vmem:[#allocation2 + $0x2f0] sm:$0xff]
    %v134 = vld [vmem:[#allocation2 + $0x2f8] sm:$0xff]
    %v135 = vld [vmem:[#allocation2 + $0x300] sm:$0xff]
    %v136 = vld [vmem:[#allocation2 + $0x308] sm:$0xff]
    %v137 = vld [vmem:[#allocation2 + $0x310] sm:$0xff]
    %v138 = vld [vmem:[#allocation2 + $0x318] sm:$0xff]
    %v139 = vld [vmem:[#allocation2 + $0x320] sm:$0xff]
    %v140 = vld [vmem:[#allocation2 + $0x328] sm:$0xff]
    %v141 = vld [vmem:[#allocation2 + $0x330] sm:$0xff]
    %v142 = vld [vmem:[#allocation2 + $0x338] sm:$0xff]
    %v143 = vld [vmem:[#allocation2 + $0x340] sm:$0xff]
    %v144 = vld [vmem:[#allocation2 + $0x348] sm:$0xff]
    %v145 = vld [vmem:[#allocation2 + $0x350] sm:$0xff]
    %v146 = vld [vmem:[#allocation2 + $0x358] sm:$0xff]
    %v147 = vld [vmem:[#allocation2 + $0x360] sm:$0xff]
    %v148 = vld [vmem:[#allocation2 + $0x368] sm:$0xff]
    %v149 = vld [vmem:[#allocation2 + $0x370] sm:$0xff]
    %v150 = vld [vmem:[#allocation2 + $0x378] sm:$0xff]
    %v151 = vld [vmem:[#allocation2 + $0x380] sm:$0xff]
    %v152 = vld [vmem:[#allocation2 + $0x388] sm:$0xff]
    %v153 = vld [vmem:[#allocation2 + $0x390] sm:$0xff]
    %v154 = vld [vmem:[#allocation2 + $0x398] sm:$0xff]
    %v155 = vld [vmem:[#allocation2 + $0x3a0] sm:$0xff]
    %v156 = vld [vmem:[#allocation2 + $0x3a8] sm:$0xff]
    %v157 = vld [vmem:[#allocation2 + $0x3b0] sm:$0xff]
    %v158 = vld [vmem:[#allocation2 + $0x3b8] sm:$0xff]
    %v159 = vld [vmem:[#allocation2 + $0x3c0] sm:$0xff]
    %v160 = vld [vmem:[#allocation2 + $0x3c8] sm:$0xff]
    %v161 = vld [vmem:[#allocation2 + $0x3d0] sm:$0xff]
    %v162 = vld [vmem:[#allocation2 + $0x3d8] sm:$0xff]
    %v163 = vld [vmem:[#allocation2 + $0x3e0] sm:$0xff]
    %v164 = vld [vmem:[#allocation2 + $0x3e8] sm:$0xff]
    %v165 = vld [vmem:[#allocation2 + $0x3f0] sm:$0xff]
    %v166 = vld [vmem:[#allocation2 + $0x3f8] sm:$0xff]
    %v167 = vld [vmem:[#allocation2 + $0x400] sm:$0xff]
    %v168 = vld [vmem:[#allocation2 + $0x408] sm:$0xff]
    %v169 = vld [vmem:[#allocation2 + $0x410] sm:$0xff]
    %v170 = vld [vmem:[#allocation2 + $0x418] sm:$0xff]
    %v171 = vld [vmem:[#allocation2 + $0x420] sm:$0xff]
    %v172 = vld [vmem:[#allocation2 + $0x428] sm:$0xff]
    %v173 = vld [vmem:[#allocation2 + $0x430] sm:$0xff]
    %v174 = vld [vmem:[#allocation2 + $0x438] sm:$0xff]
    %v175 = vld [vmem:[#allocation2 + $0x440] sm:$0xff]
    %v176 = vld [vmem:[#allocation2 + $0x448] sm:$0xff]
    %v177 = vld [vmem:[#allocation2 + $0x450] sm:$0xff]
    %v178 = vld [vmem:[#allocation2 + $0x458] sm:$0xff]
    %v179 = vld [vmem:[#allocation2 + $0x460] sm:$0xff]
    %v180 = vld [vmem:[#allocation2 + $0x468] sm:$0xff]
    %v181 = vld [vmem:[#allocation2 + $0x470] sm:$0xff]
    %v182 = vld [vmem:[#allocation2 + $0x478] sm:$0xff]
    %v183 = vld [vmem:[#allocation2 + $0x480] sm:$0xff]
    %v184 = vld [vmem:[#allocation2 + $0x488] sm:$0xff]
    %v185 = vld [vmem:[#allocation2 + $0x490] sm:$0xff]
    %v186 = vld [vmem:[#allocation2 + $0x498] sm:$0xff]
    %v187 = vld [vmem:[#allocation2 + $0x4a0] sm:$0xff]
    %v188 = vld [vmem:[#allocation2 + $0x4a8] sm:$0xff]
    %v189 = vld [vmem:[#allocation2 + $0x4b0] sm:$0xff]
    %v190 = vld [vmem:[#allocation2 + $0x4b8] sm:$0xff]
    %v191 = vld [vmem:[#allocation2 + $0x4c0] sm:$0xff]
    %v192 = vld [vmem:[#allocation2 + $0x4c8] sm:$0xff]
    %v193 = vld [vmem:[#allocation2 + $0x4d0] sm:$0xff]
    %v194 = vld [vmem:[#allocation2 + $0x4d8] sm:$0xff]
    %v195 = vld [vmem:[#allocation2 + $0x4e0] sm:$0xff]
    %v196 = vld [vmem:[#allocation2 + $0x4e8] sm:$0xff]
    %v197 = vld [vmem:[#allocation2 + $0x4f0] sm:$0xff]
    %v198 = vld [vmem:[#allocation2 + $0x4f8] sm:$0xff]
    %v199 = vld [vmem:[#allocation2 + $0x500] sm:$0xff]
    %v200 = vld [vmem:[#allocation2 + $0x508] sm:$0xff]
    %v201 = vld [vmem:[#allocation2 + $0x510] sm:$0xff]
    %v202 = vld [vmem:[#allocation2 + $0x518] sm:$0xff]
    %v203 = vld [vmem:[#allocation2 + $0x520] sm:$0xff]
    %v204 = vld [vmem:[#allocation2 + $0x528] sm:$0xff]
    %v205 = vld [vmem:[#allocation2 + $0x530] sm:$0xff]
    %v206 = vld [vmem:[#allocation2 + $0x538] sm:$0xff]
    %v207 = vld [vmem:[#allocation2 + $0x540] sm:$0xff]
    %v208 = vld [vmem:[#allocation2 + $0x548] sm:$0xff]
    %v209 = vld [vmem:[#allocation2 + $0x550] sm:$0xff]
    %v210 = vld [vmem:[#allocation2 + $0x558] sm:$0xff]
    %v211 = vld [vmem:[#allocation2 + $0x560] sm:$0xff]
    %v212 = vld [vmem:[#allocation2 + $0x568] sm:$0xff]
    %v213 = vld [vmem:[#allocation2 + $0x570] sm:$0xff]
    %v214 = vld [vmem:[#allocation2 + $0x578] sm:$0xff]
    %v215 = vld [vmem:[#allocation2 + $0x580] sm:$0xff]
    %v216 = vld [vmem:[#allocation2 + $0x588] sm:$0xff]
    %v217 = vld [vmem:[#allocation2 + $0x590] sm:$0xff]
    %v218 = vld [vmem:[#allocation2 + $0x598] sm:$0xff]
    %v219 = vld [vmem:[#allocation2 + $0x5a0] sm:$0xff]
    %v220 = vld [vmem:[#allocation2 + $0x5a8] sm:$0xff]
    %v221 = vld [vmem:[#allocation2 + $0x5b0] sm:$0xff]
    %v222 = vld [vmem:[#allocation2 + $0x5b8] sm:$0xff]
    %v223 = vld [vmem:[#allocation2 + $0x5c0] sm:$0xff]
    %v224 = vld [vmem:[#allocation2 + $0x5c8] sm:$0xff]
    %v225 = vld [vmem:[#allocation2 + $0x5d0] sm:$0xff]
    %v226 = vld [vmem:[#allocation2 + $0x5d8] sm:$0xff]
    %v227 = vld [vmem:[#allocation2 + $0x5e0] sm:$0xff]
    %v228 = vld [vmem:[#allocation2 + $0x5e8] sm:$0xff]
    %v229 = vld [vmem:[#allocation2 + $0x5f0] sm:$0xff]
    %v230 = vld [vmem:[#allocation2 + $0x5f8] sm:$0xff]
    %v231 = vld [vmem:[#allocation2 + $0x600] sm:$0xff]
    %v232 = vld [vmem:[#allocation2 + $0x608] sm:$0xff]
    %v233 = vld [vmem:[#allocation2 + $0x610] sm:$0xff]
    %v234 = vld [vmem:[#allocation2 + $0x618] sm:$0xff]
    %v235 = vld [vmem:[#allocation2 + $0x620] sm:$0xff]
    %v236 = vld [vmem:[#allocation2 + $0x628] sm:$0xff]
    %v237 = vld [vmem:[#allocation2 + $0x630] sm:$0xff]
    %v238 = vld [vmem:[#allocation2 + $0x638] sm:$0xff]
    %v239 = vld [vmem:[#allocation2 + $0x640] sm:$0xff]
    %v240 = vld [vmem:[#allocation2 + $0x648] sm:$0xff]
    %v241 = vld [vmem:[#allocation2 + $0x650] sm:$0xff]
    %v242 = vld [vmem:[#allocation2 + $0x658] sm:$0xff]
    %v243 = vld [vmem:[#allocation2 + $0x660] sm:$0xff]
    %v244 = vld [vmem:[#allocation2 + $0x668] sm:$0xff]
    %v245 = vld [vmem:[#allocation2 + $0x670] sm:$0xff]
    %v246 = vld [vmem:[#allocation2 + $0x678] sm:$0xff]
    %v247 = vld [vmem:[#allocation2 + $0x680] sm:$0xff]
    %v248 = vld [vmem:[#allocation2 + $0x688] sm:$0xff]
    %v249 = vld [vmem:[#allocation2 + $0x690] sm:$0xff]
    %v250 = vld [vmem:[#allocation2 + $0x698] sm:$0xff]
    %v251 = vld [vmem:[#allocation2 + $0x6a0] sm:$0xff]
    %v252 = vld [vmem:[#allocation2 + $0x6a8] sm:$0xff]
    %v253 = vld [vmem:[#allocation2 + $0x6b0] sm:$0xff]
    %v254 = vld [vmem:[#allocation2 + $0x6b8] sm:$0xff]
    %v255 = vld [vmem:[#allocation2 + $0x6c0] sm:$0xff]
    %v256 = vld [vmem:[#allocation2 + $0x6c8] sm:$0xff]
    %v257 = vld [vmem:[#allocation2 + $0x6d0] sm:$0xff]
    %v258 = vld [vmem:[#allocation2 + $0x6d8] sm:$0xff]
    %v259 = vld [vmem:[#allocation2 + $0x6e0] sm:$0xff]
    %v260 = vld [vmem:[#allocation2 + $0x6e8] sm:$0xff]
    %v261 = vld [vmem:[#allocation2 + $0x6f0] sm:$0xff]
    %v262 = vld [vmem:[#allocation2 + $0x6f8] sm:$0xff]
    %v263 = vld [vmem:[#allocation2 + $0x700] sm:$0xff]
    %v264 = vld [vmem:[#allocation2 + $0x708] sm:$0xff]
    %v265 = vld [vmem:[#allocation2 + $0x710] sm:$0xff]
    %v266 = vld [vmem:[#allocation2 + $0x718] sm:$0xff]
    %v267 = vld [vmem:[#allocation2 + $0x720] sm:$0xff]
    %v268 = vld [vmem:[#allocation2 + $0x728] sm:$0xff]
    %v269 = vld [vmem:[#allocation2 + $0x730] sm:$0xff]
    %v270 = vld [vmem:[#allocation2 + $0x738] sm:$0xff]
    %v271 = vld [vmem:[#allocation2 + $0x740] sm:$0xff]
    %v272 = vld [vmem:[#allocation2 + $0x748] sm:$0xff]
    %v273 = vld [vmem:[#allocation2 + $0x750] sm:$0xff]
    %v274 = vld [vmem:[#allocation2 + $0x758] sm:$0xff]
    %v275 = vld [vmem:[#allocation2 + $0x760] sm:$0xff]
    %v276 = vld [vmem:[#allocation2 + $0x768] sm:$0xff]
    %v277 = vld [vmem:[#allocation2 + $0x770] sm:$0xff]
    %v278 = vld [vmem:[#allocation2 + $0x778] sm:$0xff]
    %v279 = vld [vmem:[#allocation2 + $0x780] sm:$0xff]
    %v280 = vld [vmem:[#allocation2 + $0x788] sm:$0xff]
    %v281 = vld [vmem:[#allocation2 + $0x790] sm:$0xff]
    %v282 = vld [vmem:[#allocation2 + $0x798] sm:$0xff]
    %v283 = vld [vmem:[#allocation2 + $0x7a0] sm:$0xff]
    %v284 = vld [vmem:[#allocation2 + $0x7a8] sm:$0xff]
    %v285 = vld [vmem:[#allocation2 + $0x7b0] sm:$0xff]
    %v286 = vld [vmem:[#allocation2 + $0x7b8] sm:$0xff]
    %v287 = vld [vmem:[#allocation2 + $0x7c0] sm:$0xff]
    %v288 = vld [vmem:[#allocation2 + $0x7c8] sm:$0xff]
    %v289 = vld [vmem:[#allocation2 + $0x7d0] sm:$0xff]
    %v290 = vld [vmem:[#allocation2 + $0x7d8] sm:$0xff]
    %v291 = vld [vmem:[#allocation2 + $0x7e0] sm:$0xff]
    %v292 = vld [vmem:[#allocation2 + $0x7e8] sm:$0xff]
    %v293 = vld [vmem:[#allocation2 + $0x7f0] sm:$0xff]
    %v294 = vld [vmem:[#allocation2 + $0x7f8] sm:$0xff]
    %v295 = vld [vmem:[#allocation2 + $0x800] sm:$0xff]
    %v296 = vld [vmem:[#allocation2 + $0x808] sm:$0xff]
    %v297 = vld [vmem:[#allocation2 + $0x810] sm:$0xff]
    %v298 = vld [vmem:[#allocation2 + $0x818] sm:$0xff]
    %v299 = vld [vmem:[#allocation2 + $0x820] sm:$0xff]
    %v300 = vld [vmem:[#allocation2 + $0x828] sm:$0xff]
    %v301 = vld [vmem:[#allocation2 + $0x830] sm:$0xff]
    %v302 = vld [vmem:[#allocation2 + $0x838] sm:$0xff]
    %v303 = vld [vmem:[#allocation2 + $0x840] sm:$0xff]
    %v304 = vld [vmem:[#allocation2 + $0x848] sm:$0xff]
    %v305 = vld [vmem:[#allocation2 + $0x850] sm:$0xff]
    %v306 = vld [vmem:[#allocation2 + $0x858] sm:$0xff]
    %v307 = vld [vmem:[#allocation2 + $0x860] sm:$0xff]
    %v308 = vld [vmem:[#allocation2 + $0x868] sm:$0xff]
    %v309 = vld [vmem:[#allocation2 + $0x870] sm:$0xff]
    %v310 = vld [vmem:[#allocation2 + $0x878] sm:$0xff]
    %v311 = vld [vmem:[#allocation2 + $0x880] sm:$0xff]
    %v312 = vld [vmem:[#allocation2 + $0x888] sm:$0xff]
    %v313 = vld [vmem:[#allocation2 + $0x890] sm:$0xff]
    %v314 = vld [vmem:[#allocation2 + $0x898] sm:$0xff]
    %v315 = vld [vmem:[#allocation2 + $0x8a0] sm:$0xff]
    %v316 = vld [vmem:[#allocation2 + $0x8a8] sm:$0xff]
    %v317 = vld [vmem:[#allocation2 + $0x8b0] sm:$0xff]
    %v318 = vld [vmem:[#allocation2 + $0x8b8] sm:$0xff]
    %v319 = vld [vmem:[#allocation2 + $0x8c0] sm:$0xff]
    %v320 = vld [vmem:[#allocation2 + $0x8c8] sm:$0xff]
    %v321 = vld [vmem:[#allocation2 + $0x8d0] sm:$0xff]
    %v322 = vld [vmem:[#allocation2 + $0x8d8] sm:$0xff]
    %v323 = vld [vmem:[#allocation2 + $0x8e0] sm:$0xff]
    %v324 = vld [vmem:[#allocation2 + $0x8e8] sm:$0xff]
    %v325 = vld [vmem:[#allocation2 + $0x8f0] sm:$0xff]
    %v326 = vld [vmem:[#allocation2 + $0x8f8] sm:$0xff]
    %v327 = vld [vmem:[#allocation2 + $0x900] sm:$0xff]
    %v328 = vld [vmem:[#allocation2 + $0x908] sm:$0xff]
    %v329 = vld [vmem:[#allocation2 + $0x910] sm:$0xff]
    %v330 = vld [vmem:[#allocation2 + $0x918] sm:$0xff]
    %v331 = vld [vmem:[#allocation2 + $0x920] sm:$0xff]
    %v332 = vld [vmem:[#allocation2 + $0x928] sm:$0xff]
    %v333 = vld [vmem:[#allocation2 + $0x930] sm:$0xff]
    %v334 = vld [vmem:[#allocation2 + $0x938] sm:$0xff]
    %v335 = vld [vmem:[#allocation2 + $0x940] sm:$0xff]
    %v336 = vld [vmem:[#allocation2 + $0x948] sm:$0xff]
    %v337 = vld [vmem:[#allocation2 + $0x950] sm:$0xff]
    %v338 = vld [vmem:[#allocation2 + $0x958] sm:$0xff]
    %v339 = vld [vmem:[#allocation2 + $0x960] sm:$0xff]
    %v340 = vld [vmem:[#allocation2 + $0x968] sm:$0xff]
    %v341 = vld [vmem:[#allocation2 + $0x970] sm:$0xff]
    %v342 = vld [vmem:[#allocation2 + $0x978] sm:$0xff]
    %v343 = vld [vmem:[#allocation2 + $0x980] sm:$0xff]
    %v344 = vld [vmem:[#allocation2 + $0x988] sm:$0xff]
    %v345 = vld [vmem:[#allocation2 + $0x990] sm:$0xff]
    %v346 = vld [vmem:[#allocation2 + $0x998] sm:$0xff]
    %v347 = vld [vmem:[#allocation2 + $0x9a0] sm:$0xff]
    %v348 = vld [vmem:[#allocation2 + $0x9a8] sm:$0xff]
    %v349 = vld [vmem:[#allocation2 + $0x9b0] sm:$0xff]
    %v350 = vld [vmem:[#allocation2 + $0x9b8] sm:$0xff]
    %v351 = vld [vmem:[#allocation2 + $0x9c0] sm:$0xff]
    %v352 = vld [vmem:[#allocation2 + $0x9c8] sm:$0xff]
    %v353 = vld [vmem:[#allocation2 + $0x9d0] sm:$0xff]
    %v354 = vld [vmem:[#allocation2 + $0x9d8] sm:$0xff]
    %v355 = vld [vmem:[#allocation2 + $0x9e0] sm:$0xff]
    %v356 = vld [vmem:[#allocation2 + $0x9e8] sm:$0xff]
    %v357 = vld [vmem:[#allocation2 + $0x9f0] sm:$0xff]
    %v358 = vld [vmem:[#allocation2 + $0x9f8] sm:$0xff]
    %v359 = vld [vmem:[#allocation2 + $0xa00] sm:$0xff]
    %v360 = vld [vmem:[#allocation2 + $0xa08] sm:$0xff]
    %v361 = vld [vmem:[#allocation2 + $0xa10] sm:$0xff]
    %v362 = vld [vmem:[#allocation2 + $0xa18] sm:$0xff]
    %v363 = vld [vmem:[#allocation2 + $0xa20] sm:$0xff]
    %v364 = vld [vmem:[#allocation2 + $0xa28] sm:$0xff]
    %v365 = vld [vmem:[#allocation2 + $0xa30] sm:$0xff]
    %v366 = vld [vmem:[#allocation2 + $0xa38] sm:$0xff]
    %v367 = vld [vmem:[#allocation2 + $0xa40] sm:$0xff]
    %v368 = vld [vmem:[#allocation2 + $0xa48] sm:$0xff]
    %v369 = vld [vmem:[#allocation2 + $0xa50] sm:$0xff]
    %v370 = vld [vmem:[#allocation2 + $0xa58] sm:$0xff]
    %v371 = vld [vmem:[#allocation2 + $0xa60] sm:$0xff]
    %v372 = vld [vmem:[#allocation2 + $0xa68] sm:$0xff]
    %v373 = vld [vmem:[#allocation2 + $0xa70] sm:$0xff]
    %v374 = vld [vmem:[#allocation2 + $0xa78] sm:$0xff]
    %v375 = vld [vmem:[#allocation2 + $0xa80] sm:$0xff]
    %v376 = vld [vmem:[#allocation2 + $0xa88] sm:$0xff]
    %v377 = vld [vmem:[#allocation2 + $0xa90] sm:$0xff]
    %v378 = vld [vmem:[#allocation2 + $0xa98] sm:$0xff]
    %v379 = vld [vmem:[#allocation2 + $0xaa0] sm:$0xff]
    %v380 = vld [vmem:[#allocation2 + $0xaa8] sm:$0xff]
    %v381 = vld [vmem:[#allocation2 + $0xab0] sm:$0xff]
    %v382 = vld [vmem:[#allocation2 + $0xab8] sm:$0xff]
    %v383 = vld [vmem:[#allocation2 + $0xac0] sm:$0xff]
    %v384 = vld [vmem:[#allocation2 + $0xac8] sm:$0xff]
    %v385 = vld [vmem:[#allocation2 + $0xad0] sm:$0xff]
    %v386 = vld [vmem:[#allocation2 + $0xad8] sm:$0xff]
    %v387 = vld [vmem:[#allocation2 + $0xae0] sm:$0xff]
    %v388 = vld [vmem:[#allocation2 + $0xae8] sm:$0xff]
    %v389 = vld [vmem:[#allocation2 + $0xaf0] sm:$0xff]
    %v390 = vld [vmem:[#allocation2 + $0xaf8] sm:$0xff]
    %v391 = vld [vmem:[#allocation2 + $0xb00] sm:$0xff]
    %v392 = vld [vmem:[#allocation2 + $0xb08] sm:$0xff]
    %v393 = vld [vmem:[#allocation2 + $0xb10] sm:$0xff]
    %v394 = vld [vmem:[#allocation2 + $0xb18] sm:$0xff]
    %v395 = vld [vmem:[#allocation2 + $0xb20] sm:$0xff]
    %v396 = vld [vmem:[#allocation2 + $0xb28] sm:$0xff]
    %v397 = vld [vmem:[#allocation2 + $0xb30] sm:$0xff]
    %v398 = vld [vmem:[#allocation2 + $0xb38] sm:$0xff]
    %v399 = vld [vmem:[#allocation2 + $0xb40] sm:$0xff]
    %v400 = vld [vmem:[#allocation2 + $0xb48] sm:$0xff]
    %v401 = vld [vmem:[#allocation2 + $0xb50] sm:$0xff]
    %v402 = vld [vmem:[#allocation2 + $0xb58] sm:$0xff]
    %v403 = vld [vmem:[#allocation2 + $0xb60] sm:$0xff]
    %v404 = vld [vmem:[#allocation2 + $0xb68] sm:$0xff]
    %v405 = vld [vmem:[#allocation2 + $0xb70] sm:$0xff]
    %v406 = vld [vmem:[#allocation2 + $0xb78] sm:$0xff]
    %v407 = vld [vmem:[#allocation2 + $0xb80] sm:$0xff]
    %v408 = vld [vmem:[#allocation2 + $0xb88] sm:$0xff]
    %v409 = vld [vmem:[#allocation2 + $0xb90] sm:$0xff]
    %v410 = vld [vmem:[#allocation2 + $0xb98] sm:$0xff]
    %v411 = vld [vmem:[#allocation2 + $0xba0] sm:$0xff]
    %v412 = vld [vmem:[#allocation2 + $0xba8] sm:$0xff]
    %v413 = vld [vmem:[#allocation2 + $0xbb0] sm:$0xff]
    %v414 = vld [vmem:[#allocation2 + $0xbb8] sm:$0xff]
    %v415 = vld [vmem:[#allocation2 + $0xbc0] sm:$0xff]
    %v416 = vld [vmem:[#allocation2 + $0xbc8] sm:$0xff]
    %v417 = vld [vmem:[#allocation2 + $0xbd0] sm:$0xff]
    %v418 = vld [vmem:[#allocation2 + $0xbd8] sm:$0xff]
    %v419 = vld [vmem:[#allocation2 + $0xbe0] sm:$0xff]
    %v420 = vld [vmem:[#allocation2 + $0xbe8] sm:$0xff]
    %v421 = vld [vmem:[#allocation2 + $0xbf0] sm:$0xff]
    %v422 = vld [vmem:[#allocation2 + $0xbf8] sm:$0xff]
    %v423 = vld [vmem:[#allocation2 + $0xc00] sm:$0xff]
    %v424 = vld [vmem:[#allocation2 + $0xc08] sm:$0xff]
    %v425 = vld [vmem:[#allocation2 + $0xc10] sm:$0xff]
    %v426 = vld [vmem:[#allocation2 + $0xc18] sm:$0xff]
    %v427 = vld [vmem:[#allocation2 + $0xc20] sm:$0xff]
    %v428 = vld [vmem:[#allocation2 + $0xc28] sm:$0xff]
    %v429 = vld [vmem:[#allocation2 + $0xc30] sm:$0xff]
    %v430 = vld [vmem:[#allocation2 + $0xc38] sm:$0xff]
    %v431 = vld [vmem:[#allocation2 + $0xc40] sm:$0xff]
    %v432 = vld [vmem:[#allocation2 + $0xc48] sm:$0xff]
    %v433 = vld [vmem:[#allocation2 + $0xc50] sm:$0xff]
    %v434 = vld [vmem:[#allocation2 + $0xc58] sm:$0xff]
    %v435 = vld [vmem:[#allocation2 + $0xc60] sm:$0xff]
    %v436 = vld [vmem:[#allocation2 + $0xc68] sm:$0xff]
    %v437 = vld [vmem:[#allocation2 + $0xc70] sm:$0xff]
    %v438 = vld [vmem:[#allocation2 + $0xc78] sm:$0xff]
    %v439 = vld [vmem:[#allocation2 + $0xc80] sm:$0xff]
    %v440 = vld [vmem:[#allocation2 + $0xc88] sm:$0xff]
    %v441 = vld [vmem:[#allocation2 + $0xc90] sm:$0xff]
    %v442 = vld [vmem:[#allocation2 + $0xc98] sm:$0xff]
    %v443 = vld [vmem:[#allocation2 + $0xca0] sm:$0xff]
    %v444 = vld [vmem:[#allocation2 + $0xca8] sm:$0xff]
    %v445 = vld [vmem:[#allocation2 + $0xcb0] sm:$0xff]
    %v446 = vld [vmem:[#allocation2 + $0xcb8] sm:$0xff]
    %v447 = vld [vmem:[#allocation2 + $0xcc0] sm:$0xff]
    %v448 = vld [vmem:[#allocation2 + $0xcc8] sm:$0xff]
    %v449 = vld [vmem:[#allocation2 + $0xcd0] sm:$0xff]
    %v450 = vld [vmem:[#allocation2 + $0xcd8] sm:$0xff]
    %v451 = vld [vmem:[#allocation2 + $0xce0] sm:$0xff]
    %v452 = vld [vmem:[#allocation2 + $0xce8] sm:$0xff]
    %v453 = vld [vmem:[#allocation2 + $0xcf0] sm:$0xff]
    %v454 = vld [vmem:[#allocation2 + $0xcf8] sm:$0xff]
    %v455 = vld [vmem:[#allocation2 + $0xd00] sm:$0xff]
    %v456 = vld [vmem:[#allocation2 + $0xd08] sm:$0xff]
    %v457 = vld [vmem:[#allocation2 + $0xd10] sm:$0xff]
    %v458 = vld [vmem:[#allocation2 + $0xd18] sm:$0xff]
    %v459 = vld [vmem:[#allocation2 + $0xd20] sm:$0xff]
    %v460 = vld [vmem:[#allocation2 + $0xd28] sm:$0xff]
    %v461 = vld [vmem:[#allocation2 + $0xd30] sm:$0xff]
    %v462 = vld [vmem:[#allocation2 + $0xd38] sm:$0xff]
    %v463 = vld [vmem:[#allocation2 + $0xd40] sm:$0xff]
    %v464 = vld [vmem:[#allocation2 + $0xd48] sm:$0xff]
    %v465 = vld [vmem:[#allocation2 + $0xd50] sm:$0xff]
    %v466 = vld [vmem:[#allocation2 + $0xd58] sm:$0xff]
    %v467 = vld [vmem:[#allocation2 + $0xd60] sm:$0xff]
    %v468 = vld [vmem:[#allocation2 + $0xd68] sm:$0xff]
    %v469 = vld [vmem:[#allocation2 + $0xd70] sm:$0xff]
    %v470 = vld [vmem:[#allocation2 + $0xd78] sm:$0xff]
    %v471 = vld [vmem:[#allocation2 + $0xd80] sm:$0xff]
    %v472 = vld [vmem:[#allocation2 + $0xd88] sm:$0xff]
    %v473 = vld [vmem:[#allocation2 + $0xd90] sm:$0xff]
    %v474 = vld [vmem:[#allocation2 + $0xd98] sm:$0xff]
    %v475 = vld [vmem:[#allocation2 + $0xda0] sm:$0xff]
    %v476 = vld [vmem:[#allocation2 + $0xda8] sm:$0xff]
    %v477 = vld [vmem:[#allocation2 + $0xdb0] sm:$0xff]
    %v478 = vld [vmem:[#allocation2 + $0xdb8] sm:$0xff]
    %v479 = vld [vmem:[#allocation2 + $0xdc0] sm:$0xff]
    %v480 = vld [vmem:[#allocation2 + $0xdc8] sm:$0xff]
    %v481 = vld [vmem:[#allocation2 + $0xdd0] sm:$0xff]
    %v482 = vld [vmem:[#allocation2 + $0xdd8] sm:$0xff]
    %v483 = vld [vmem:[#allocation2 + $0xde0] sm:$0xff]
    %v484 = vld [vmem:[#allocation2 + $0xde8] sm:$0xff]
    %v485 = vld [vmem:[#allocation2 + $0xdf0] sm:$0xff]
    %v486 = vld [vmem:[#allocation2 + $0xdf8] sm:$0xff]
    %v487 = vld [vmem:[#allocation2 + $0xe00] sm:$0xff]
    %v488 = vld [vmem:[#allocation2 + $0xe08] sm:$0xff]
    %v489 = vld [vmem:[#allocation2 + $0xe10] sm:$0xff]
    %v490 = vld [vmem:[#allocation2 + $0xe18] sm:$0xff]
    %v491 = vld [vmem:[#allocation2 + $0xe20] sm:$0xff]
    %v492 = vld [vmem:[#allocation2 + $0xe28] sm:$0xff]
    %v493 = vld [vmem:[#allocation2 + $0xe30] sm:$0xff]
    %v494 = vld [vmem:[#allocation2 + $0xe38] sm:$0xff]
    %v495 = vld [vmem:[#allocation2 + $0xe40] sm:$0xff]
    %v496 = vld [vmem:[#allocation2 + $0xe48] sm:$0xff]
    %v497 = vld [vmem:[#allocation2 + $0xe50] sm:$0xff]
    %v498 = vld [vmem:[#allocation2 + $0xe58] sm:$0xff]
    %v499 = vld [vmem:[#allocation2 + $0xe60] sm:$0xff]
    %v500 = vld [vmem:[#allocation2 + $0xe68] sm:$0xff]
    %v501 = vld [vmem:[#allocation2 + $0xe70] sm:$0xff]
    %v502 = vld [vmem:[#allocation2 + $0xe78] sm:$0xff]
    %v503 = vld [vmem:[#allocation2 + $0xe80] sm:$0xff]
    %v504 = vld [vmem:[#allocation2 + $0xe88] sm:$0xff]
    %v505 = vld [vmem:[#allocation2 + $0xe90] sm:$0xff]
    %v506 = vld [vmem:[#allocation2 + $0xe98] sm:$0xff]
    %v507 = vld [vmem:[#allocation2 + $0xea0] sm:$0xff]
    %v508 = vld [vmem:[#allocation2 + $0xea8] sm:$0xff]
    %v509 = vld [vmem:[#allocation2 + $0xeb0] sm:$0xff]
    %v510 = vld [vmem:[#allocation2 + $0xeb8] sm:$0xff]
    %v511 = vld [vmem:[#allocation2 + $0xec0] sm:$0xff]
    %v512 = vld [vmem:[#allocation2 + $0xec8] sm:$0xff]
    %v513 = vld [vmem:[#allocation2 + $0xed0] sm:$0xff]
    %v514 = vld [vmem:[#allocation2 + $0xed8] sm:$0xff]
    %v515 = vld [vmem:[#allocation2 + $0xee0] sm:$0xff]
    %v516 = vld [vmem:[#allocation2 + $0xee8] sm:$0xff]
    %v517 = vld [vmem:[#allocation2 + $0xef0] sm:$0xff]
    %v518 = vld [vmem:[#allocation2 + $0xef8] sm:$0xff]
    %v519 = vld [vmem:[#allocation2 + $0xf00] sm:$0xff]
    %v520 = vld [vmem:[#allocation2 + $0xf08] sm:$0xff]
    %v521 = vld [vmem:[#allocation2 + $0xf10] sm:$0xff]
    %v522 = vld [vmem:[#allocation2 + $0xf18] sm:$0xff]
    %v523 = vld [vmem:[#allocation2 + $0xf20] sm:$0xff]
    %v524 = vld [vmem:[#allocation2 + $0xf28] sm:$0xff]
    %v525 = vld [vmem:[#allocation2 + $0xf30] sm:$0xff]
    %v526 = vld [vmem:[#allocation2 + $0xf38] sm:$0xff]
    %v527 = vld [vmem:[#allocation2 + $0xf40] sm:$0xff]
    %v528 = vld [vmem:[#allocation2 + $0xf48] sm:$0xff]
    %v529 = vld [vmem:[#allocation2 + $0xf50] sm:$0xff]
    %v530 = vld [vmem:[#allocation2 + $0xf58] sm:$0xff]
    %v531 = vld [vmem:[#allocation2 + $0xf60] sm:$0xff]
    %v532 = vld [vmem:[#allocation2 + $0xf68] sm:$0xff]
    %v533 = vld [vmem:[#allocation2 + $0xf70] sm:$0xff]
    %v534 = vld [vmem:[#allocation2 + $0xf78] sm:$0xff]
    %v535 = vld [vmem:[#allocation2 + $0xf80] sm:$0xff]
    %v536 = vld [vmem:[#allocation2 + $0xf88] sm:$0xff]
    %v537 = vld [vmem:[#allocation2 + $0xf90] sm:$0xff]
    %v538 = vld [vmem:[#allocation2 + $0xf98] sm:$0xff]
    %v539 = vld [vmem:[#allocation2 + $0xfa0] sm:$0xff]
    %v540 = vld [vmem:[#allocation2 + $0xfa8] sm:$0xff]
    %v541 = vld [vmem:[#allocation2 + $0xfb0] sm:$0xff]
    %v542 = vld [vmem:[#allocation2 + $0xfb8] sm:$0xff]
    %v543 = vld [vmem:[#allocation2 + $0xfc0] sm:$0xff]
    %v544 = vld [vmem:[#allocation2 + $0xfc8] sm:$0xff]
    %v545 = vld [vmem:[#allocation2 + $0xfd0] sm:$0xff]
    %v546 = vld [vmem:[#allocation2 + $0xfd8] sm:$0xff]
    %v547 = vld [vmem:[#allocation2 + $0xfe0] sm:$0xff]
    %v548 = vld [vmem:[#allocation2 + $0xfe8] sm:$0xff]
    %v549 = vld [vmem:[#allocation2 + $0xff0] sm:$0xff]
    %v550 = vld [vmem:[#allocation2 + $0xff8] sm:$0xff]
    %v551 = vld [vmem:[#allocation2 + $0x1000] sm:$0xff]
    %v552 = vld [vmem:[#allocation2 + $0x1008] sm:$0xff]
    %v553 = vld [vmem:[#allocation2 + $0x1010] sm:$0xff]
    %v554 = vld [vmem:[#allocation2 + $0x1018] sm:$0xff]
    %v555 = vld [vmem:[#allocation2 + $0x1020] sm:$0xff]
    %v556 = vld [vmem:[#allocation2 + $0x1028] sm:$0xff]
    %v557 = vld [vmem:[#allocation2 + $0x1030] sm:$0xff]
    %v558 = vld [vmem:[#allocation2 + $0x1038] sm:$0xff]
    %v559 = vld [vmem:[#allocation2 + $0x1040] sm:$0xff]
    %v560 = vld [vmem:[#allocation2 + $0x1048] sm:$0xff]
    %v561 = vld [vmem:[#allocation2 + $0x1050] sm:$0xff]
    %v562 = vld [vmem:[#allocation2 + $0x1058] sm:$0xff]
    %v563 = vld [vmem:[#allocation2 + $0x1060] sm:$0xff]
    %v564 = vld [vmem:[#allocation2 + $0x1068] sm:$0xff]
    %v565 = vld [vmem:[#allocation2 + $0x1070] sm:$0xff]
    %v566 = vld [vmem:[#allocation2 + $0x1078] sm:$0xff]
    %v567 = vld [vmem:[#allocation2 + $0x1080] sm:$0xff]
    %v568 = vld [vmem:[#allocation2 + $0x1088] sm:$0xff]
    %v569 = vld [vmem:[#allocation2 + $0x1090] sm:$0xff]
    %v570 = vld [vmem:[#allocation2 + $0x1098] sm:$0xff]
    %v571 = vld [vmem:[#allocation2 + $0x10a0] sm:$0xff]
    %v572 = vld [vmem:[#allocation2 + $0x10a8] sm:$0xff]
    %v573 = vld [vmem:[#allocation2 + $0x10b0] sm:$0xff]
    %v574 = vld [vmem:[#allocation2 + $0x10b8] sm:$0xff]
    %v575 = vld [vmem:[#allocation2 + $0x10c0] sm:$0xff]
    %v576 = vld [vmem:[#allocation2 + $0x10c8] sm:$0xff]
    %v577 = vld [vmem:[#allocation2 + $0x10d0] sm:$0xff]
    %v578 = vld [vmem:[#allocation2 + $0x10d8] sm:$0xff]
    %v579 = vld [vmem:[#allocation2 + $0x10e0] sm:$0xff]
    %v580 = vld [vmem:[#allocation2 + $0x10e8] sm:$0xff]
    %v581 = vld [vmem:[#allocation2 + $0x10f0] sm:$0xff]
    %v582 = vld [vmem:[#allocation2 + $0x10f8] sm:$0xff]
    %v583 = vld [vmem:[#allocation2 + $0x1100] sm:$0xff]
    %v584 = vld [vmem:[#allocation2 + $0x1108] sm:$0xff]
    %v585 = vld [vmem:[#allocation2 + $0x1110] sm:$0xff]
    %v586 = vld [vmem:[#allocation2 + $0x1118] sm:$0xff]
    %v587 = vld [vmem:[#allocation2 + $0x1120] sm:$0xff]
    %v588 = vld [vmem:[#allocation2 + $0x1128] sm:$0xff]
    %v589 = vld [vmem:[#allocation2 + $0x1130] sm:$0xff]
    %v590 = vld [vmem:[#allocation2 + $0x1138] sm:$0xff]
    %v591 = vld [vmem:[#allocation2 + $0x1140] sm:$0xff]
    %v592 = vld [vmem:[#allocation2 + $0x1148] sm:$0xff]
    %v593 = vld [vmem:[#allocation2 + $0x1150] sm:$0xff]
    %v594 = vld [vmem:[#allocation2 + $0x1158] sm:$0xff]
    %v595 = vld [vmem:[#allocation2 + $0x1160] sm:$0xff]
    %v596 = vld [vmem:[#allocation2 + $0x1168] sm:$0xff]
    %v597 = vld [vmem:[#allocation2 + $0x1170] sm:$0xff]
    %v598 = vld [vmem:[#allocation2 + $0x1178] sm:$0xff]
    %v599 = vld [vmem:[#allocation2 + $0x1180] sm:$0xff]
    %v600 = vld [vmem:[#allocation2 + $0x1188] sm:$0xff]
    %v601 = vld [vmem:[#allocation2 + $0x1190] sm:$0xff]
    %v602 = vld [vmem:[#allocation2 + $0x1198] sm:$0xff]
    %v603 = vld [vmem:[#allocation2 + $0x11a0] sm:$0xff]
    %v604 = vld [vmem:[#allocation2 + $0x11a8] sm:$0xff]
    %v605 = vld [vmem:[#allocation2 + $0x11b0] sm:$0xff]
    %v606 = vld [vmem:[#allocation2 + $0x11b8] sm:$0xff]
    %v607 = vld [vmem:[#allocation2 + $0x11c0] sm:$0xff]
    %v608 = vld [vmem:[#allocation2 + $0x11c8] sm:$0xff]
    %v609 = vld [vmem:[#allocation2 + $0x11d0] sm:$0xff]
    %v610 = vld [vmem:[#allocation2 + $0x11d8] sm:$0xff]
    %v611 = vld [vmem:[#allocation2 + $0x11e0] sm:$0xff]
    %v612 = vld [vmem:[#allocation2 + $0x11e8] sm:$0xff]
    %v613 = vld [vmem:[#allocation2 + $0x11f0] sm:$0xff]
    %v614 = vld [vmem:[#allocation2 + $0x11f8] sm:$0xff]
    %615 = vmatprep.subr.mxu0 %v40
    %616 = vmatpush1.msra.mxu0 %v39
    %617 = vmatprep.subr.mxu0 %v58
    %618 = vmatpush1.msra.mxu0 %v57
    %619 = vmatprep.subr.mxu0 %v76
    %620 = vmatpush1.msra.mxu0 %v75
    %621 = vmatprep.subr.mxu0 %v94
    %622 = vmatpush1.msra.mxu0 %v93
    %623 = vmatprep.subr.mxu0 %v112
    %624 = vmatpush1.msra.mxu0 %v111
    %625 = vmatprep.subr.mxu0 %v130
    %626 = vmatpush1.msra.mxu0 %v129
    %627 = vmatprep.subr.mxu0 %v148
    %628 = vmatpush1.msra.mxu0 %v147
    %629 = vmatprep.subr.mxu0 %v166
    %630 = vmatpush1.msra.mxu0 %v165
    %631 = vmatprep.subr.mxu0 %v184
    %632 = vmatpush1.msra.mxu0 %v183
    %633 = vmatprep.subr.mxu0 %v202
    %634 = vmatpush1.msra.mxu0 %v201
    %635 = vmatprep.subr.mxu0 %v220
    %636 = vmatpush1.msra.mxu0 %v219
    %637 = vmatprep.subr.mxu0 %v238
    %638 = vmatpush1.msra.mxu0 %v237
    %639 = vmatprep.subr.mxu0 %v256
    %640 = vmatpush1.msra.mxu0 %v255
    %641 = vmatprep.subr.mxu0 %v274
    %642 = vmatpush1.msra.mxu0 %v273
    %643 = vmatprep.subr.mxu0 %v292
    %644 = vmatpush1.msra.mxu0 %v291
    %645 = vmatprep.subr.mxu0 %v310
    %646 = vmatpush1.msra.mxu0 %v309
    %647 = vmatprep.subr.mxu0 %v328
    %648 = vmatpush1.msra.mxu0 %v327
    %649 = vmatprep.subr.mxu0 %v346
    %650 = vmatpush1.msra.mxu0 %v345
    %651 = vmatprep.subr.mxu0 %v364
    %652 = vmatpush1.msra.mxu0 %v363
    %653 = vmatprep.subr.mxu0 %v382
    %654 = vmatpush1.msra.mxu0 %v381
    %655 = vmatprep.subr.mxu0 %v400
    %656 = vmatpush1.msra.mxu0 %v399
    %657 = vmatprep.subr.mxu0 %v418
    %658 = vmatpush1.msra.mxu0 %v417
    %659 = vmatprep.subr.mxu0 %v436
    %660 = vmatpush1.msra.mxu0 %v435
    %661 = vmatprep.subr.mxu0 %v454
    %662 = vmatpush1.msra.mxu0 %v453
    %663 = vmatprep.subr.mxu0 %v472
    %664 = vmatpush1.msra.mxu0 %v471
    %665 = vmatprep.subr.mxu0 %v490
    %666 = vmatpush1.msra.mxu0 %v489
    %667 = vmatprep.subr.mxu0 %v508
    %668 = vmatpush1.msra.mxu0 %v507
    %669 = vmatprep.subr.mxu0 %v526
    %670 = vmatpush1.msra.mxu0 %v525
    %671 = vmatprep.subr.mxu0 %v544
    %672 = vmatpush1.msra.mxu0 %v543
    %673 = vmatprep.subr.mxu0 %v562
    %674 = vmatpush1.msra.mxu0 %v561
    %675 = vmatprep.subr.mxu0 %v580
    %676 = vmatpush1.msra.mxu0 %v579
    %677 = vmatprep.subr.mxu0 %v598
    %678 = vmatpush1.msra.mxu0 %v597
    %679 = vmatprep.mubr.f32.mxu0 %v38
    %680 = vmatmul.mubr.f32.gmra.mrb[0].mxu0 %v37
    %v681 = vpop.f32.mrb[0].mxu0
    %v682 = vadd.f32 0.0, %v681
    %v683 = vpop.f32.mrb[0].mxu0
    %v684 = vadd.f32 0.0, %v683
    %685 = vdwg.mxu0
    %686 = vmatprep.subr.mxu0 %v42
    %687 = vmatpush1.msra.mxu0 %v41
    %688 = vmatprep.subr.mxu0 %v60
    %689 = vmatpush1.msra.mxu0 %v59
    %690 = vmatprep.subr.mxu0 %v78
    %691 = vmatpush1.msra.mxu0 %v77
    %692 = vmatprep.subr.mxu0 %v96
    %693 = vmatpush1.msra.mxu0 %v95
    %694 = vmatprep.subr.mxu0 %v114
    %695 = vmatpush1.msra.mxu0 %v113
    %696 = vmatprep.subr.mxu0 %v132
    %697 = vmatpush1.msra.mxu0 %v131
    %698 = vmatprep.subr.mxu0 %v150
    %699 = vmatpush1.msra.mxu0 %v149
    %700 = vmatprep.subr.mxu0 %v168
    %701 = vmatpush1.msra.mxu0 %v167
    %702 = vmatprep.subr.mxu0 %v186
    %703 = vmatpush1.msra.mxu0 %v185
    %704 = vmatprep.subr.mxu0 %v204
    %705 = vmatpush1.msra.mxu0 %v203
    %706 = vmatprep.subr.mxu0 %v222
    %707 = vmatpush1.msra.mxu0 %v221
    %708 = vmatprep.subr.mxu0 %v240
    %709 = vmatpush1.msra.mxu0 %v239
    %710 = vmatprep.subr.mxu0 %v258
    %711 = vmatpush1.msra.mxu0 %v257
    %712 = vmatprep.subr.mxu0 %v276
    %713 = vmatpush1.msra.mxu0 %v275
    %714 = vmatprep.subr.mxu0 %v294
    %715 = vmatpush1.msra.mxu0 %v293
    %716 = vmatprep.subr.mxu0 %v312
    %717 = vmatpush1.msra.mxu0 %v311
    %718 = vmatprep.subr.mxu0 %v330
    %719 = vmatpush1.msra.mxu0 %v329
    %720 = vmatprep.subr.mxu0 %v348
    %721 = vmatpush1.msra.mxu0 %v347
    %722 = vmatprep.subr.mxu0 %v366
    %723 = vmatpush1.msra.mxu0 %v365
    %724 = vmatprep.subr.mxu0 %v384
    %725 = vmatpush1.msra.mxu0 %v383
    %726 = vmatprep.subr.mxu0 %v402
    %727 = vmatpush1.msra.mxu0 %v401
    %728 = vmatprep.subr.mxu0 %v420
    %729 = vmatpush1.msra.mxu0 %v419
    %730 = vmatprep.subr.mxu0 %v438
    %731 = vmatpush1.msra.mxu0 %v437
    %732 = vmatprep.subr.mxu0 %v456
    %733 = vmatpush1.msra.mxu0 %v455
    %734 = vmatprep.subr.mxu0 %v474
    %735 = vmatpush1.msra.mxu0 %v473
    %736 = vmatprep.subr.mxu0 %v492
    %737 = vmatpush1.msra.mxu0 %v491
    %738 = vmatprep.subr.mxu0 %v510
    %739 = vmatpush1.msra.mxu0 %v509
    %740 = vmatprep.subr.mxu0 %v528
    %741 = vmatpush1.msra.mxu0 %v527
    %742 = vmatprep.subr.mxu0 %v546
    %743 = vmatpush1.msra.mxu0 %v545
    %744 = vmatprep.subr.mxu0 %v564
    %745 = vmatpush1.msra.mxu0 %v563
    %746 = vmatprep.subr.mxu0 %v582
    %747 = vmatpush1.msra.mxu0 %v581
    %748 = vmatprep.subr.mxu0 %v600
    %749 = vmatpush1.msra.mxu0 %v599
    %750 = vmatprep.mubr.f32.mxu0 %v38
    %751 = vmatmul.mubr.f32.gmra.mrb[0].mxu0 %v37
    %v752 = vpop.f32.mrb[0].mxu0
    %v753 = vadd.f32 0.0, %v752
    %v754 = vpop.f32.mrb[0].mxu0
    %v755 = vadd.f32 0.0, %v754
    %756 = vdwg.mxu0
    %757 = vmatprep.subr.mxu0 %v44
    %758 = vmatpush1.msra.mxu0 %v43
    %759 = vmatprep.subr.mxu0 %v62
    %760 = vmatpush1.msra.mxu0 %v61
    %761 = vmatprep.subr.mxu0 %v80
    %762 = vmatpush1.msra.mxu0 %v79
    %763 = vmatprep.subr.mxu0 %v98
    %764 = vmatpush1.msra.mxu0 %v97
    %765 = vmatprep.subr.mxu0 %v116
    %766 = vmatpush1.msra.mxu0 %v115
    %767 = vmatprep.subr.mxu0 %v134
    %768 = vmatpush1.msra.mxu0 %v133
    %769 = vmatprep.subr.mxu0 %v152
    %770 = vmatpush1.msra.mxu0 %v151
    %771 = vmatprep.subr.mxu0 %v170
    %772 = vmatpush1.msra.mxu0 %v169
    %773 = vmatprep.subr.mxu0 %v188
    %774 = vmatpush1.msra.mxu0 %v187
    %775 = vmatprep.subr.mxu0 %v206
    %776 = vmatpush1.msra.mxu0 %v205
    %777 = vmatprep.subr.mxu0 %v224
    %778 = vmatpush1.msra.mxu0 %v223
    %779 = vmatprep.subr.mxu0 %v242
    %780 = vmatpush1.msra.mxu0 %v241
    %781 = vmatprep.subr.mxu0 %v260
    %782 = vmatpush1.msra.mxu0 %v259
    %783 = vmatprep.subr.mxu0 %v278
    %784 = vmatpush1.msra.mxu0 %v277
    %785 = vmatprep.subr.mxu0 %v296
    %786 = vmatpush1.msra.mxu0 %v295
    %787 = vmatprep.subr.mxu0 %v314
    %788 = vmatpush1.msra.mxu0 %v313
    %789 = vmatprep.subr.mxu0 %v332
    %790 = vmatpush1.msra.mxu0 %v331
    %791 = vmatprep.subr.mxu0 %v350
    %792 = vmatpush1.msra.mxu0 %v349
    %793 = vmatprep.subr.mxu0 %v368
    %794 = vmatpush1.msra.mxu0 %v367
    %795 = vmatprep.subr.mxu0 %v386
    %796 = vmatpush1.msra.mxu0 %v385
    %797 = vmatprep.subr.mxu0 %v404
    %798 = vmatpush1.msra.mxu0 %v403
    %799 = vmatprep.subr.mxu0 %v422
    %800 = vmatpush1.msra.mxu0 %v421
    %801 = vmatprep.subr.mxu0 %v440
    %802 = vmatpush1.msra.mxu0 %v439
    %803 = vmatprep.subr.mxu0 %v458
    %804 = vmatpush1.msra.mxu0 %v457
    %805 = vmatprep.subr.mxu0 %v476
    %806 = vmatpush1.msra.mxu0 %v475
    %807 = vmatprep.subr.mxu0 %v494
    %808 = vmatpush1.msra.mxu0 %v493
    %809 = vmatprep.subr.mxu0 %v512
    %810 = vmatpush1.msra.mxu0 %v511
    %811 = vmatprep.subr.mxu0 %v530
    %812 = vmatpush1.msra.mxu0 %v529
    %813 = vmatprep.subr.mxu0 %v548
    %814 = vmatpush1.msra.mxu0 %v547
    %815 = vmatprep.subr.mxu0 %v566
    %816 = vmatpush1.msra.mxu0 %v565
    %817 = vmatprep.subr.mxu0 %v584
    %818 = vmatpush1.msra.mxu0 %v583
    %819 = vmatprep.subr.mxu0 %v602
    %820 = vmatpush1.msra.mxu0 %v601
    %821 = vmatprep.mubr.f32.mxu0 %v38
    %822 = vmatmul.mubr.f32.gmra.mrb[0].mxu0 %v37
    %v823 = vpop.f32.mrb[0].mxu0
    %v824 = vadd.f32 0.0, %v823
    %v825 = vpop.f32.mrb[0].mxu0
    %v826 = vadd.f32 0.0, %v825
    %827 = vdwg.mxu0
    %828 = vmatprep.subr.mxu0 %v46
    %829 = vmatpush1.msra.mxu0 %v45
    %830 = vmatprep.subr.mxu0 %v64
    %831 = vmatpush1.msra.mxu0 %v63
    %832 = vmatprep.subr.mxu0 %v82
    %833 = vmatpush1.msra.mxu0 %v81
    %834 = vmatprep.subr.mxu0 %v100
    %835 = vmatpush1.msra.mxu0 %v99
    %836 = vmatprep.subr.mxu0 %v118
    %837 = vmatpush1.msra.mxu0 %v117
    %838 = vmatprep.subr.mxu0 %v136
    %839 = vmatpush1.msra.mxu0 %v135
    %840 = vmatprep.subr.mxu0 %v154
    %841 = vmatpush1.msra.mxu0 %v153
    %842 = vmatprep.subr.mxu0 %v172
    %843 = vmatpush1.msra.mxu0 %v171
    %844 = vmatprep.subr.mxu0 %v190
    %845 = vmatpush1.msra.mxu0 %v189
    %846 = vmatprep.subr.mxu0 %v208
    %847 = vmatpush1.msra.mxu0 %v207
    %848 = vmatprep.subr.mxu0 %v226
    %849 = vmatpush1.msra.mxu0 %v225
    %850 = vmatprep.subr.mxu0 %v244
    %851 = vmatpush1.msra.mxu0 %v243
    %852 = vmatprep.subr.mxu0 %v262
    %853 = vmatpush1.msra.mxu0 %v261
    %854 = vmatprep.subr.mxu0 %v280
    %855 = vmatpush1.msra.mxu0 %v279
    %856 = vmatprep.subr.mxu0 %v298
    %857 = vmatpush1.msra.mxu0 %v297
    %858 = vmatprep.subr.mxu0 %v316
    %859 = vmatpush1.msra.mxu0 %v315
    %860 = vmatprep.subr.mxu0 %v334
    %861 = vmatpush1.msra.mxu0 %v333
    %862 = vmatprep.subr.mxu0 %v352
    %863 = vmatpush1.msra.mxu0 %v351
    %864 = vmatprep.subr.mxu0 %v370
    %865 = vmatpush1.msra.mxu0 %v369
    %866 = vmatprep.subr.mxu0 %v388
    %867 = vmatpush1.msra.mxu0 %v387
    %868 = vmatprep.subr.mxu0 %v406
    %869 = vmatpush1.msra.mxu0 %v405
    %870 = vmatprep.subr.mxu0 %v424
    %871 = vmatpush1.msra.mxu0 %v423
    %872 = vmatprep.subr.mxu0 %v442
    %873 = vmatpush1.msra.mxu0 %v441
    %874 = vmatprep.subr.mxu0 %v460
    %875 = vmatpush1.msra.mxu0 %v459
    %876 = vmatprep.subr.mxu0 %v478
    %877 = vmatpush1.msra.mxu0 %v477
    %878 = vmatprep.subr.mxu0 %v496
    %879 = vmatpush1.msra.mxu0 %v495
    %880 = vmatprep.subr.mxu0 %v514
    %881 = vmatpush1.msra.mxu0 %v513
    %882 = vmatprep.subr.mxu0 %v532
    %883 = vmatpush1.msra.mxu0 %v531
    %884 = vmatprep.subr.mxu0 %v550
    %885 = vmatpush1.msra.mxu0 %v549
    %886 = vmatprep.subr.mxu0 %v568
    %887 = vmatpush1.msra.mxu0 %v567
    %888 = vmatprep.subr.mxu0 %v586
    %889 = vmatpush1.msra.mxu0 %v585
    %890 = vmatprep.subr.mxu0 %v604
    %891 = vmatpush1.msra.mxu0 %v603
    %892 = vmatprep.mubr.f32.mxu0 %v38
    %893 = vmatmul.mubr.f32.gmra.mrb[0].mxu0 %v37
    %v894 = vpop.f32.mrb[0].mxu0
    %v895 = vadd.f32 0.0, %v894
    %v896 = vpop.f32.mrb[0].mxu0
    %v897 = vadd.f32 0.0, %v896
    %898 = vdwg.mxu0
    %899 = vmatprep.subr.mxu0 %v48
    %900 = vmatpush1.msra.mxu0 %v47
    %901 = vmatprep.subr.mxu0 %v66
    %902 = vmatpush1.msra.mxu0 %v65
    %903 = vmatprep.subr.mxu0 %v84
    %904 = vmatpush1.msra.mxu0 %v83
    %905 = vmatprep.subr.mxu0 %v102
    %906 = vmatpush1.msra.mxu0 %v101
    %907 = vmatprep.subr.mxu0 %v120
    %908 = vmatpush1.msra.mxu0 %v119
    %909 = vmatprep.subr.mxu0 %v138
    %910 = vmatpush1.msra.mxu0 %v137
    %911 = vmatprep.subr.mxu0 %v156
    %912 = vmatpush1.msra.mxu0 %v155
    %913 = vmatprep.subr.mxu0 %v174
    %914 = vmatpush1.msra.mxu0 %v173
    %915 = vmatprep.subr.mxu0 %v192
    %916 = vmatpush1.msra.mxu0 %v191
    %917 = vmatprep.subr.mxu0 %v210
    %918 = vmatpush1.msra.mxu0 %v209
    %919 = vmatprep.subr.mxu0 %v228
    %920 = vmatpush1.msra.mxu0 %v227
    %921 = vmatprep.subr.mxu0 %v246
    %922 = vmatpush1.msra.mxu0 %v245
    %923 = vmatprep.subr.mxu0 %v264
    %924 = vmatpush1.msra.mxu0 %v263
    %925 = vmatprep.subr.mxu0 %v282
    %926 = vmatpush1.msra.mxu0 %v281
    %927 = vmatprep.subr.mxu0 %v300
    %928 = vmatpush1.msra.mxu0 %v299
    %929 = vmatprep.subr.mxu0 %v318
    %930 = vmatpush1.msra.mxu0 %v317
    %931 = vmatprep.subr.mxu0 %v336
    %932 = vmatpush1.msra.mxu0 %v335
    %933 = vmatprep.subr.mxu0 %v354
    %934 = vmatpush1.msra.mxu0 %v353
    %935 = vmatprep.subr.mxu0 %v372
    %936 = vmatpush1.msra.mxu0 %v371
    %937 = vmatprep.subr.mxu0 %v390
    %938 = vmatpush1.msra.mxu0 %v389
    %939 = vmatprep.subr.mxu0 %v408
    %940 = vmatpush1.msra.mxu0 %v407
    %941 = vmatprep.subr.mxu0 %v426
    %942 = vmatpush1.msra.mxu0 %v425
    %943 = vmatprep.subr.mxu0 %v444
    %944 = vmatpush1.msra.mxu0 %v443
    %945 = vmatprep.subr.mxu0 %v462
    %946 = vmatpush1.msra.mxu0 %v461
    %947 = vmatprep.subr.mxu0 %v480
    %948 = vmatpush1.msra.mxu0 %v479
    %949 = vmatprep.subr.mxu0 %v498
    %950 = vmatpush1.msra.mxu0 %v497
    %951 = vmatprep.subr.mxu0 %v516
    %952 = vmatpush1.msra.mxu0 %v515
    %953 = vmatprep.subr.mxu0 %v534
    %954 = vmatpush1.msra.mxu0 %v533
    %955 = vmatprep.subr.mxu0 %v552
    %956 = vmatpush1.msra.mxu0 %v551
    %957 = vmatprep.subr.mxu0 %v570
    %958 = vmatpush1.msra.mxu0 %v569
    %959 = vmatprep.subr.mxu0 %v588
    %960 = vmatpush1.msra.mxu0 %v587
    %961 = vmatprep.subr.mxu0 %v606
    %962 = vmatpush1.msra.mxu0 %v605
    %963 = vmatprep.mubr.f32.mxu0 %v38
    %964 = vmatmul.mubr.f32.gmra.mrb[0].mxu0 %v37
    %v965 = vpop.f32.mrb[0].mxu0
    %v966 = vadd.f32 0.0, %v965
    %v967 = vpop.f32.mrb[0].mxu0
    %v968 = vadd.f32 0.0, %v967
    %969 = vdwg.mxu0
    %970 = vmatprep.subr.mxu0 %v50
    %971 = vmatpush1.msra.mxu0 %v49
    %972 = vmatprep.subr.mxu0 %v68
    %973 = vmatpush1.msra.mxu0 %v67
    %974 = vmatprep.subr.mxu0 %v86
    %975 = vmatpush1.msra.mxu0 %v85
    %976 = vmatprep.subr.mxu0 %v104
    %977 = vmatpush1.msra.mxu0 %v103
    %978 = vmatprep.subr.mxu0 %v122
    %979 = vmatpush1.msra.mxu0 %v121
    %980 = vmatprep.subr.mxu0 %v140
    %981 = vmatpush1.msra.mxu0 %v139
    %982 = vmatprep.subr.mxu0 %v158
    %983 = vmatpush1.msra.mxu0 %v157
    %984 = vmatprep.subr.mxu0 %v176
    %985 = vmatpush1.msra.mxu0 %v175
    %986 = vmatprep.subr.mxu0 %v194
    %987 = vmatpush1.msra.mxu0 %v193
    %988 = vmatprep.subr.mxu0 %v212
    %989 = vmatpush1.msra.mxu0 %v211
    %990 = vmatprep.subr.mxu0 %v230
    %991 = vmatpush1.msra.mxu0 %v229
    %992 = vmatprep.subr.mxu0 %v248
    %993 = vmatpush1.msra.mxu0 %v247
    %994 = vmatprep.subr.mxu0 %v266
    %995 = vmatpush1.msra.mxu0 %v265
    %996 = vmatprep.subr.mxu0 %v284
    %997 = vmatpush1.msra.mxu0 %v283
    %998 = vmatprep.subr.mxu0 %v302
    %999 = vmatpush1.msra.mxu0 %v301
    %1000 = vmatprep.subr.mxu0 %v320
    %1001 = vmatpush1.msra.mxu0 %v319
    %1002 = vmatprep.subr.mxu0 %v338
    %1003 = vmatpush1.msra.mxu0 %v337
    %1004 = vmatprep.subr.mxu0 %v356
    %1005 = vmatpush1.msra.mxu0 %v355
    %1006 = vmatprep.subr.mxu0 %v374
    %1007 = vmatpush1.msra.mxu0 %v373
    %1008 = vmatprep.subr.mxu0 %v392
    %1009 = vmatpush1.msra.mxu0 %v391
    %1010 = vmatprep.subr.mxu0 %v410
    %1011 = vmatpush1.msra.mxu0 %v409
    %1012 = vmatprep.subr.mxu0 %v428
    %1013 = vmatpush1.msra.mxu0 %v427
    %1014 = vmatprep.subr.mxu0 %v446
    %1015 = vmatpush1.msra.mxu0 %v445
    %1016 = vmatprep.subr.mxu0 %v464
    %1017 = vmatpush1.msra.mxu0 %v463
    %1018 = vmatprep.subr.mxu0 %v482
    %1019 = vmatpush1.msra.mxu0 %v481
    %1020 = vmatprep.subr.mxu0 %v500
    %1021 = vmatpush1.msra.mxu0 %v499
    %1022 = vmatprep.subr.mxu0 %v518
    %1023 = vmatpush1.msra.mxu0 %v517
    %1024 = vmatprep.subr.mxu0 %v536
    %1025 = vmatpush1.msra.mxu0 %v535
    %1026 = vmatprep.subr.mxu0 %v554
    %1027 = vmatpush1.msra.mxu0 %v553
    %1028 = vmatprep.subr.mxu0 %v572
    %1029 = vmatpush1.msra.mxu0 %v571
    %1030 = vmatprep.subr.mxu0 %v590
    %1031 = vmatpush1.msra.mxu0 %v589
    %1032 = vmatprep.subr.mxu0 %v608
    %1033 = vmatpush1.msra.mxu0 %v607
    %1034 = vmatprep.mubr.f32.mxu0 %v38
    %1035 = vmatmul.mubr.f32.gmra.mrb[0].mxu0 %v37
    %v1036 = vpop.f32.mrb[0].mxu0
    %v1037 = vadd.f32 0.0, %v1036
    %v1038 = vpop.f32.mrb[0].mxu0
    %v1039 = vadd.f32 0.0, %v1038
    %1040 = vdwg.mxu0
    %1041 = vmatprep.subr.mxu0 %v52
    %1042 = vmatpush1.msra.mxu0 %v51
    %1043 = vmatprep.subr.mxu0 %v70
    %1044 = vmatpush1.msra.mxu0 %v69
    %1045 = vmatprep.subr.mxu0 %v88
    %1046 = vmatpush1.msra.mxu0 %v87
    %1047 = vmatprep.subr.mxu0 %v106
    %1048 = vmatpush1.msra.mxu0 %v105
    %1049 = vmatprep.subr.mxu0 %v124
    %1050 = vmatpush1.msra.mxu0 %v123
    %1051 = vmatprep.subr.mxu0 %v142
    %1052 = vmatpush1.msra.mxu0 %v141
    %1053 = vmatprep.subr.mxu0 %v160
    %1054 = vmatpush1.msra.mxu0 %v159
    %1055 = vmatprep.subr.mxu0 %v178
    %1056 = vmatpush1.msra.mxu0 %v177
    %1057 = vmatprep.subr.mxu0 %v196
    %1058 = vmatpush1.msra.mxu0 %v195
    %1059 = vmatprep.subr.mxu0 %v214
    %1060 = vmatpush1.msra.mxu0 %v213
    %1061 = vmatprep.subr.mxu0 %v232
    %1062 = vmatpush1.msra.mxu0 %v231
    %1063 = vmatprep.subr.mxu0 %v250
    %1064 = vmatpush1.msra.mxu0 %v249
    %1065 = vmatprep.subr.mxu0 %v268
    %1066 = vmatpush1.msra.mxu0 %v267
    %1067 = vmatprep.subr.mxu0 %v286
    %1068 = vmatpush1.msra.mxu0 %v285
    %1069 = vmatprep.subr.mxu0 %v304
    %1070 = vmatpush1.msra.mxu0 %v303
    %1071 = vmatprep.subr.mxu0 %v322
    %1072 = vmatpush1.msra.mxu0 %v321
    %1073 = vmatprep.subr.mxu0 %v340
    %1074 = vmatpush1.msra.mxu0 %v339
    %1075 = vmatprep.subr.mxu0 %v358
    %1076 = vmatpush1.msra.mxu0 %v357
    %1077 = vmatprep.subr.mxu0 %v376
    %1078 = vmatpush1.msra.mxu0 %v375
    %1079 = vmatprep.subr.mxu0 %v394
    %1080 = vmatpush1.msra.mxu0 %v393
    %1081 = vmatprep.subr.mxu0 %v412
    %1082 = vmatpush1.msra.mxu0 %v411
    %1083 = vmatprep.subr.mxu0 %v430
    %1084 = vmatpush1.msra.mxu0 %v429
    %1085 = vmatprep.subr.mxu0 %v448
    %1086 = vmatpush1.msra.mxu0 %v447
    %1087 = vmatprep.subr.mxu0 %v466
    %1088 = vmatpush1.msra.mxu0 %v465
    %1089 = vmatprep.subr.mxu0 %v484
    %1090 = vmatpush1.msra.mxu0 %v483
    %1091 = vmatprep.subr.mxu0 %v502
    %1092 = vmatpush1.msra.mxu0 %v501
    %1093 = vmatprep.subr.mxu0 %v520
    %1094 = vmatpush1.msra.mxu0 %v519
    %1095 = vmatprep.subr.mxu0 %v538
    %1096 = vmatpush1.msra.mxu0 %v537
    %1097 = vmatprep.subr.mxu0 %v556
    %1098 = vmatpush1.msra.mxu0 %v555
    %1099 = vmatprep.subr.mxu0 %v574
    %1100 = vmatpush1.msra.mxu0 %v573
    %1101 = vmatprep.subr.mxu0 %v592
    %1102 = vmatpush1.msra.mxu0 %v591
    %1103 = vmatprep.subr.mxu0 %v610
    %1104 = vmatpush1.msra.mxu0 %v609
    %1105 = vmatprep.mubr.f32.mxu0 %v38
    %1106 = vmatmul.mubr.f32.gmra.mrb[0].mxu0 %v37
    %v1107 = vpop.f32.mrb[0].mxu0
    %v1108 = vadd.f32 0.0, %v1107
    %v1109 = vpop.f32.mrb[0].mxu0
    %v1110 = vadd.f32 0.0, %v1109
    %1111 = vdwg.mxu0
    %1112 = vmatprep.subr.mxu0 %v54
    %1113 = vmatpush1.msra.mxu0 %v53
    %1114 = vmatprep.subr.mxu0 %v72
    %1115 = vmatpush1.msra.mxu0 %v71
    %1116 = vmatprep.subr.mxu0 %v90
    %1117 = vmatpush1.msra.mxu0 %v89
    %1118 = vmatprep.subr.mxu0 %v108
    %1119 = vmatpush1.msra.mxu0 %v107
    %1120 = vmatprep.subr.mxu0 %v126
    %1121 = vmatpush1.msra.mxu0 %v125
    %1122 = vmatprep.subr.mxu0 %v144
    %1123 = vmatpush1.msra.mxu0 %v143
    %1124 = vmatprep.subr.mxu0 %v162
    %1125 = vmatpush1.msra.mxu0 %v161
    %1126 = vmatprep.subr.mxu0 %v180
    %1127 = vmatpush1.msra.mxu0 %v179
    %1128 = vmatprep.subr.mxu0 %v198
    %1129 = vmatpush1.msra.mxu0 %v197
    %1130 = vmatprep.subr.mxu0 %v216
    %1131 = vmatpush1.msra.mxu0 %v215
    %1132 = vmatprep.subr.mxu0 %v234
    %1133 = vmatpush1.msra.mxu0 %v233
    %1134 = vmatprep.subr.mxu0 %v252
    %1135 = vmatpush1.msra.mxu0 %v251
    %1136 = vmatprep.subr.mxu0 %v270
    %1137 = vmatpush1.msra.mxu0 %v269
    %1138 = vmatprep.subr.mxu0 %v288
    %1139 = vmatpush1.msra.mxu0 %v287
    %1140 = vmatprep.subr.mxu0 %v306
    %1141 = vmatpush1.msra.mxu0 %v305
    %1142 = vmatprep.subr.mxu0 %v324
    %1143 = vmatpush1.msra.mxu0 %v323
    %1144 = vmatprep.subr.mxu0 %v342
    %1145 = vmatpush1.msra.mxu0 %v341
    %1146 = vmatprep.subr.mxu0 %v360
    %1147 = vmatpush1.msra.mxu0 %v359
    %1148 = vmatprep.subr.mxu0 %v378
    %1149 = vmatpush1.msra.mxu0 %v377
    %1150 = vmatprep.subr.mxu0 %v396
    %1151 = vmatpush1.msra.mxu0 %v395
    %1152 = vmatprep.subr.mxu0 %v414
    %1153 = vmatpush1.msra.mxu0 %v413
    %1154 = vmatprep.subr.mxu0 %v432
    %1155 = vmatpush1.msra.mxu0 %v431
    %1156 = vmatprep.subr.mxu0 %v450
    %1157 = vmatpush1.msra.mxu0 %v449
    %1158 = vmatprep.subr.mxu0 %v468
    %1159 = vmatpush1.msra.mxu0 %v467
    %1160 = vmatprep.subr.mxu0 %v486
    %1161 = vmatpush1.msra.mxu0 %v485
    %1162 = vmatprep.subr.mxu0 %v504
    %1163 = vmatpush1.msra.mxu0 %v503
    %1164 = vmatprep.subr.mxu0 %v522
    %1165 = vmatpush1.msra.mxu0 %v521
    %1166 = vmatprep.subr.mxu0 %v540
    %1167 = vmatpush1.msra.mxu0 %v539
    %1168 = vmatprep.subr.mxu0 %v558
    %1169 = vmatpush1.msra.mxu0 %v557
    %1170 = vmatprep.subr.mxu0 %v576
    %1171 = vmatpush1.msra.mxu0 %v575
    %1172 = vmatprep.subr.mxu0 %v594
    %1173 = vmatpush1.msra.mxu0 %v593
    %1174 = vmatprep.subr.mxu0 %v612
    %1175 = vmatpush1.msra.mxu0 %v611
    %1176 = vmatprep.mubr.f32.mxu0 %v38
    %1177 = vmatmul.mubr.f32.gmra.mrb[0].mxu0 %v37
    %v1178 = vpop.f32.mrb[0].mxu0
    %v1179 = vadd.f32 0.0, %v1178
    %v1180 = vpop.f32.mrb[0].mxu0
    %v1181 = vadd.f32 0.0, %v1180
    %1182 = vdwg.mxu0
    %1183 = vmatprep.subr.mxu0 %v56
    %1184 = vmatpush1.msra.mxu0 %v55
    %1185 = vmatprep.subr.mxu0 %v74
    %1186 = vmatpush1.msra.mxu0 %v73
    %1187 = vmatprep.subr.mxu0 %v92
    %1188 = vmatpush1.msra.mxu0 %v91
    %1189 = vmatprep.subr.mxu0 %v110
    %1190 = vmatpush1.msra.mxu0 %v109
    %1191 = vmatprep.subr.mxu0 %v128
    %1192 = vmatpush1.msra.mxu0 %v127
    %1193 = vmatprep.subr.mxu0 %v146
    %1194 = vmatpush1.msra.mxu0 %v145
    %1195 = vmatprep.subr.mxu0 %v164
    %1196 = vmatpush1.msra.mxu0 %v163
    %1197 = vmatprep.subr.mxu0 %v182
    %1198 = vmatpush1.msra.mxu0 %v181
    %1199 = vmatprep.subr.mxu0 %v200
    %1200 = vmatpush1.msra.mxu0 %v199
    %1201 = vmatprep.subr.mxu0 %v218
    %1202 = vmatpush1.msra.mxu0 %v217
    %1203 = vmatprep.subr.mxu0 %v236
    %1204 = vmatpush1.msra.mxu0 %v235
    %1205 = vmatprep.subr.mxu0 %v254
    %1206 = vmatpush1.msra.mxu0 %v253
    %1207 = vmatprep.subr.mxu0 %v272
    %1208 = vmatpush1.msra.mxu0 %v271
    %1209 = vmatprep.subr.mxu0 %v290
    %1210 = vmatpush1.msra.mxu0 %v289
    %1211 = vmatprep.subr.mxu0 %v308
    %1212 = vmatpush1.msra.mxu0 %v307
    %1213 = vmatprep.subr.mxu0 %v326
    %1214 = vmatpush1.msra.mxu0 %v325
    %1215 = vmatprep.subr.mxu0 %v344
    %1216 = vmatpush1.msra.mxu0 %v343
    %1217 = vmatprep.subr.mxu0 %v362
    %1218 = vmatpush1.msra.mxu0 %v361
    %1219 = vmatprep.subr.mxu0 %v380
    %1220 = vmatpush1.msra.mxu0 %v379
    %1221 = vmatprep.subr.mxu0 %v398
    %1222 = vmatpush1.msra.mxu0 %v397
    %1223 = vmatprep.subr.mxu0 %v416
    %1224 = vmatpush1.msra.mxu0 %v415
    %1225 = vmatprep.subr.mxu0 %v434
    %1226 = vmatpush1.msra.mxu0 %v433
    %1227 = vmatprep.subr.mxu0 %v452
    %1228 = vmatpush1.msra.mxu0 %v451
    %1229 = vmatprep.subr.mxu0 %v470
    %1230 = vmatpush1.msra.mxu0 %v469
    %1231 = vmatprep.subr.mxu0 %v488
    %1232 = vmatpush1.msra.mxu0 %v487
    %1233 = vmatprep.subr.mxu0 %v506
    %1234 = vmatpush1.msra.mxu0 %v505
    %1235 = vmatprep.subr.mxu0 %v524
    %1236 = vmatpush1.msra.mxu0 %v523
    %1237 = vmatprep.subr.mxu0 %v542
    %1238 = vmatpush1.msra.mxu0 %v541
    %1239 = vmatprep.subr.mxu0 %v560
    %1240 = vmatpush1.msra.mxu0 %v559
    %1241 = vmatprep.subr.mxu0 %v578
    %1242 = vmatpush1.msra.mxu0 %v577
    %1243 = vmatprep.subr.mxu0 %v596
    %1244 = vmatpush1.msra.mxu0 %v595
    %1245 = vmatprep.subr.mxu0 %v614
    %1246 = vmatpush1.msra.mxu0 %v613
    %1247 = vmatprep.mubr.f32.mxu0 %v38
    %1248 = vmatmul.mubr.f32.gmra.mrb[0].mxu0 %v37
    %v1249 = vpop.f32.mrb[0].mxu0
    %v1250 = vadd.f32 0.0, %v1249
    %v1251 = vpop.f32.mrb[0].mxu0
    %v1252 = vadd.f32 0.0, %v1251
    %1253 = vdwg.mxu0
    %v1254 = vld [vmem:[%s3] sm:$0xff]
    %v1255 = vld [vmem:[%s2] sm:$0xff]
    %1257 = vset.pattern.permute.xlu0 0
    %1258 = vperm.xlu0 %1257, %v1255
    %v1259 = vpop.permute.xlu0 %1258
    %v1261 = vmul.f32 %v682, %v1259
    %v1262 = vmul.f32 %v684, %v1259
    %1264 = vset.pattern.permute.xlu0 0
    %1265 = vperm.xlu0 %1264, %v1254
    %v1266 = vpop.permute.xlu0 %1265
    %v1268 = vadd.f32 %v1266, %v1261
    %v1269 = vadd.f32 %v1266, %v1262
    %s1270 = scalar_lea.vmem %s2, 8
    %v1271 = vld [vmem:[%s1270] sm:$0xff]
    %1273 = vset.pattern.permute.xlu0 0
    %1274 = vperm.xlu0 %1273, %v1271
    %v1275 = vpop.permute.xlu0 %1274
    %v1277 = vmul.f32 %v753, %v1275
    %v1278 = vmul.f32 %v755, %v1275
    %s1279 = scalar_lea.vmem %s2, 16
    %v1280 = vld [vmem:[%s1279] sm:$0xff]
    %1282 = vset.pattern.permute.xlu0 0
    %1283 = vperm.xlu0 %1282, %v1280
    %v1284 = vpop.permute.xlu0 %1283
    %v1286 = vmul.f32 %v824, %v1284
    %v1287 = vmul.f32 %v826, %v1284
    %s1288 = scalar_lea.vmem %s2, 24
    %v1289 = vld [vmem:[%s1288] sm:$0xff]
    %1291 = vset.pattern.permute.xlu0 0
    %1292 = vperm.xlu0 %1291, %v1289
    %v1293 = vpop.permute.xlu0 %1292
    %v1295 = vmul.f32 %v895, %v1293
    %v1296 = vmul.f32 %v897, %v1293
    %v1297 = vadd.f32 %v1268, %v1295
    %v1298 = vadd.f32 %v1269, %v1296
    %s1299 = scalar_lea.vmem %s2, 32
    %v1300 = vld [vmem:[%s1299] sm:$0xff]
    %1302 = vset.pattern.permute.xlu0 0
    %1303 = vperm.xlu0 %1302, %v1300
    %v1304 = vpop.permute.xlu0 %1303
    %v1306 = vmul.f32 %v966, %v1304
    %v1307 = vmul.f32 %v968, %v1304
    %v1308 = vadd.f32 %v1277, %v1306
    %v1309 = vadd.f32 %v1278, %v1307
    %s1310 = scalar_lea.vmem %s2, 40
    %v1311 = vld [vmem:[%s1310] sm:$0xff]
    %1313 = vset.pattern.permute.xlu0 0
    %1314 = vperm.xlu0 %1313, %v1311
    %v1315 = vpop.permute.xlu0 %1314
    %v1317 = vmul.f32 %v1037, %v1315
    %v1318 = vmul.f32 %v1039, %v1315
    %v1319 = vadd.f32 %v1286, %v1317
    %v1320 = vadd.f32 %v1287, %v1318
    %s1321 = scalar_lea.vmem %s2, 48
    %v1322 = vld [vmem:[%s1321] sm:$0xff]
    %1324 = vset.pattern.permute.xlu0 0
    %1325 = vperm.xlu0 %1324, %v1322
    %v1326 = vpop.permute.xlu0 %1325
    %v1328 = vmul.f32 %v1108, %v1326
    %v1329 = vmul.f32 %v1110, %v1326
    %v1330 = vadd.f32 %v1297, %v1328
    %v1331 = vadd.f32 %v1298, %v1329
    %s1332 = scalar_lea.vmem %s2, 56
    %v1333 = vld [vmem:[%s1332] sm:$0xff]
    %1335 = vset.pattern.permute.xlu0 0
    %1336 = vperm.xlu0 %1335, %v1333
    %v1337 = vpop.permute.xlu0 %1336
    %v1339 = vmul.f32 %v1179, %v1337
    %v1340 = vmul.f32 %v1181, %v1337
    %v1341 = vadd.f32 %v1308, %v1339
    %v1342 = vadd.f32 %v1309, %v1340
    %s1343 = scalar_lea.vmem %s2, 64
    %v1344 = vld [vmem:[%s1343] sm:$0xff]
    %1346 = vset.pattern.permute.xlu0 0
    %1347 = vperm.xlu0 %1346, %v1344
    %v1348 = vpop.permute.xlu0 %1347
    %v1350 = vmul.f32 %v1250, %v1348
    %v1351 = vmul.f32 %v1252, %v1348
    %v1352 = vadd.f32 %v1319, %v1350
    %v1353 = vadd.f32 %v1320, %v1351
    %v1354 = vadd.f32 %v1330, %v1341
    %v1355 = vadd.f32 %v1331, %v1342
    %v1356 = vadd.f32 %v1354, %v1352
    %v1357 = vadd.f32 %v1355, %v1353
    %v1358 = vmax.f32 %v1356, 0.0
    %v1359 = vmax.f32 %v1357, 0.0
    %v1360 = vld [vmem:[%s4] sm:$0xff]
    %v1361 = vld [vmem:[%s4 + $0x8] sm:$0xff]
    %v1362 = vld [vmem:[%s5] sm:$0xff]
    %v1363 = vld [vmem:[%s5 + $0x8] sm:$0xff]
    %1365 = vset.pattern.permute.xlu0 0
    %1366 = vperm.xlu0 %1365, %v1362
    %v1367 = vpop.permute.xlu0 %1366
    %1370 = vset.pattern.permute.xlu0 0
    %1371 = vperm.xlu0 %1370, %v1363
    %v1372 = vpop.permute.xlu0 %1371
    %vm1374 = vcmask 64512
    %v1376 = vsel %vm1374, %v1360, 0
    %v1379 = vsel %vm1374, %v1361, 0
    %1381 = vmatprep.subr.mxu0 %v1359
    %1382 = vmatpush1.msra.mxu0 %v1358
    %1383 = vmatprep.subr.mxu0 0.0
    %1384 = vmatpush1.msra.mxu0 0.0
    %1385 = vmatprep.subr.mxu0 0.0
    %1386 = vmatpush1.msra.mxu0 0.0
    %1387 = vmatprep.subr.mxu0 0.0
    %1388 = vmatpush1.msra.mxu0 0.0
    %1389 = vmatprep.subr.mxu0 0.0
    %1390 = vmatpush1.msra.mxu0 0.0
    %1391 = vmatprep.subr.mxu0 0.0
    %1392 = vmatpush1.msra.mxu0 0.0
    %1393 = vmatprep.subr.mxu0 0.0
    %1394 = vmatpush1.msra.mxu0 0.0
    %1395 = vmatprep.subr.mxu0 0.0
    %1396 = vmatpush1.msra.mxu0 0.0
    %1397 = vmatprep.subr.mxu0 0.0
    %1398 = vmatpush1.msra.mxu0 0.0
    %1399 = vmatprep.subr.mxu0 0.0
    %1400 = vmatpush1.msra.mxu0 0.0
    %1401 = vmatprep.subr.mxu0 0.0
    %1402 = vmatpush1.msra.mxu0 0.0
    %1403 = vmatprep.subr.mxu0 0.0
    %1404 = vmatpush1.msra.mxu0 0.0
    %1405 = vmatprep.subr.mxu0 0.0
    %1406 = vmatpush1.msra.mxu0 0.0
    %1407 = vmatprep.subr.mxu0 0.0
    %1408 = vmatpush1.msra.mxu0 0.0
    %1409 = vmatprep.subr.mxu0 0.0
    %1410 = vmatpush1.msra.mxu0 0.0
    %1411 = vmatprep.subr.mxu0 0.0
    %1412 = vmatpush1.msra.mxu0 0.0
    %1413 = vmatprep.subr.mxu0 0.0
    %1414 = vmatpush1.msra.mxu0 0.0
    %1415 = vmatprep.subr.mxu0 0.0
    %1416 = vmatpush1.msra.mxu0 0.0
    %1417 = vmatprep.subr.mxu0 0.0
    %1418 = vmatpush1.msra.mxu0 0.0
    %1419 = vmatprep.subr.mxu0 0.0
    %1420 = vmatpush1.msra.mxu0 0.0
    %1421 = vmatprep.subr.mxu0 0.0
    %1422 = vmatpush1.msra.mxu0 0.0
    %1423 = vmatprep.subr.mxu0 0.0
    %1424 = vmatpush1.msra.mxu0 0.0
    %1425 = vmatprep.subr.mxu0 0.0
    %1426 = vmatpush1.msra.mxu0 0.0
    %1427 = vmatprep.subr.mxu0 0.0
    %1428 = vmatpush1.msra.mxu0 0.0
    %1429 = vmatprep.subr.mxu0 0.0
    %1430 = vmatpush1.msra.mxu0 0.0
    %1431 = vmatprep.subr.mxu0 0.0
    %1432 = vmatpush1.msra.mxu0 0.0
    %1433 = vmatprep.subr.mxu0 0.0
    %1434 = vmatpush1.msra.mxu0 0.0
    %1435 = vmatprep.subr.mxu0 0.0
    %1436 = vmatpush1.msra.mxu0 0.0
    %1437 = vmatprep.subr.mxu0 0.0
    %1438 = vmatpush1.msra.mxu0 0.0
    %1439 = vmatprep.subr.mxu0 0.0
    %1440 = vmatpush1.msra.mxu0 0.0
    %1441 = vmatprep.subr.mxu0 0.0
    %1442 = vmatpush1.msra.mxu0 0.0
    %1443 = vmatprep.subr.mxu0 0.0
    %1444 = vmatpush1.msra.mxu0 0.0
    %1445 = vmatprep.mubr.f32.mxu0 0.0
    %1446 = vmatmul.mubr.f32.gmra.mrb[0].mxu0 %v1376
    %v1447 = vpop.f32.mrb[0].mxu0
    %v1448 = vadd.f32 %v1367, %v1447
    %v1449 = vpop.f32.mrb[0].mxu0
    %v1450 = vadd.f32 %v1367, %v1449
    %1451 = vmatprep.mubr.f32.mxu0 0.0
    %1452 = vmatmul.mubr.f32.gmra.mrb[0].mxu0 %v1379
    %v1453 = vpop.f32.mrb[0].mxu0
    %v1454 = vadd.f32 %v1372, %v1453
    %v1455 = vpop.f32.mrb[0].mxu0
    %v1456 = vadd.f32 %v1372, %v1455
    %1457 = vdwg.mxu0
    %v1458 = vmax.f32 %v1448, 0.0
    %v1459 = vmax.f32 %v1450, 0.0
    %v1460 = vmax.f32 %v1454, 0.0
    %v1461 = vmax.f32 %v1456, 0.0
    %1462 = vst [vmem:[%s6] sm:$0xff] %v1458
    %1463 = vst [vmem:[%s6 + $0x8] sm:$0xff] %v1459
    %1464 = vst [vmem:[%s6 + $0x10] sm:$0xff] %v1460
    %1465 = vst [vmem:[%s6 + $0x18] sm:$0xff] %v1461
    // Predicated region
    $region30: #{depthwise_separable_conv.1} parent=1 // pred_check
      _
    $region31: #{depthwise_separable_conv.1} parent=1 // pred_check_branch
      %1467 = sbr.rel (0) target = $region33
    $region32: #{depthwise_separable_conv.1} parent=1 // pred_region
      _
    $region33: #{depthwise_separable_conv.1} parent=1 // pred_fallthru
      _
    // Predicated region
    $region34: #{depthwise_separable_conv.1} parent=1 // pred_check
      _
    $region35: #{depthwise_separable_conv.1} parent=1 // pred_check_branch
      %1469 = sbr.rel (0) target = $region37
    $region36: #{depthwise_separable_conv.1} parent=1 // pred_region
      _
    $region37: #{depthwise_separable_conv.1} parent=1 // pred_fallthru
      _
    %1470 = vsyncpa [#allocation3], 1

</llo_original>
